<compile_context>
chip_gen: v7x
topology: tpu7x:2x2x1
jax: 0.10.0
libtpu: 0.0.40
codegen_flags: <defaults>
</compile_context>

<pallas_src>
import math

import jax
import jax.numpy as jnp
from jax.experimental import pallas as pl
from jax.experimental.pallas import tpu as pltpu

# ------------------------------- config --------------------------------------
B = 2          # batch
T = 8          # sequence length (block_size)
C = 32         # n_embd
N_HEAD = 4     # n_head
HD = C // N_HEAD
DROPOUT = 0.0  # inference: attn_dropout / resid_dropout are no-ops
# TODO(synk): attn_dropout / resid_dropout omitted (inference path, p = 0.0).


# ---------------------------- Pallas kernel ----------------------------------
def attn_kernel(x_ref, w_ref, b_ref, o_ref, y_ref):
    # x_ref : (B, T, C)  f32
    # w_ref : (C, 4C)    bf16  = [ Wqkv (Q cols pre-scaled) | Wo ]
    # b_ref : (1, 4C)    f32   = [ bqkv (Q part pre-scaled) | bo ]
    # y_ref : (B*T, C)   f32 VMEM scratch (per-head output slab)
    w = w_ref[...]                                   # (C, 4C) bf16
    bias = b_ref[0]                                  # (4C,)   f32
    b_qkv = bias[: 3 * C]
    b_o = bias[3 * C:]

    # QKV projection for all B*T tokens in one matmul (bf16 in, f32 acc).
    x = x_ref[...].reshape(B * T, C)                 # (16, 32) f32
    qkv = jnp.dot(x.astype(jnp.bfloat16), w[:, : 3 * C],
                  preferred_element_type=jnp.float32) + b_qkv      # (16, 96)

    # Causal mask — built exactly once (grid is collapsed to a single step).
    row = jax.lax.broadcasted_iota(jnp.int32, (T, T), 0)
    col = jax.lax.broadcasted_iota(jnp.int32, (T, T), 1)
    causal = row >= col

    # Static loops: B=2 batches x N_HEAD=4 heads.
    for bi in range(B):
        r0 = bi * T
        for h in range(N_HEAD):
            c0 = h * HD
            qh = qkv[r0:r0 + T, 0 * C + c0:0 * C + c0 + HD].astype(jnp.bfloat16)
            kh = qkv[r0:r0 + T, 1 * C + c0:1 * C + c0 + HD].astype(jnp.bfloat16)
            vh = qkv[r0:r0 + T, 2 * C + c0:2 * C + c0 + HD].astype(jnp.bfloat16)

            # Scaled logits (1/sqrt(HD) already folded into the Q weights).
            # Contract last dims of both operands -> no explicit transpose.
            att = jax.lax.dot_general(
                qh, kh, (((1,), (1,)), ((), ())),
                preferred_element_type=jnp.float32)                # (T, T) f32
            att = jnp.where(causal, att, -jnp.inf)
            att = jnp.exp(att - jnp.max(att, axis=-1, keepdims=True))
            att = att * pl.reciprocal(
                jnp.sum(att, axis=-1, keepdims=True), approx=True)

            yh = jnp.dot(att.astype(jnp.bfloat16), vh,
                         preferred_element_type=jnp.float32)       # (T, HD)
            # write head result into its column slice (no concatenate)
            y_ref[r0:r0 + T, c0:c0 + HD] = yh

    # Output projection: y @ Wo + bo
    y = y_ref[...].astype(jnp.bfloat16)                            # (16, 32)
    out = jnp.dot(y, w[:, 3 * C:], preferred_element_type=jnp.float32) + b_o
    o_ref[...] = out.reshape(B, T, C).astype(o_ref.dtype)


# ------------------------------- wrapper --------------------------------------
def causal_self_attention(x, wqkv, bqkv, wo, bo):
    scale = 1.0 / math.sqrt(HD)
    # Fold the softmax scale into the Q projection (weights + bias) host-side,
    # then pack everything into one weight slab and one bias slab.
    wqkv_s = wqkv.at[:, :C].multiply(scale)
    bqkv_s = bqkv.at[:C].multiply(scale)
    w_packed = jnp.concatenate([wqkv_s, wo], axis=1).astype(jnp.bfloat16)  # (C, 4C)
    b_packed = jnp.concatenate([bqkv_s, bo]).reshape(1, 4 * C).astype(jnp.float32)

    return pl.pallas_call(
        attn_kernel,
        out_shape=jax.ShapeDtypeStruct((B, T, C), x.dtype),
        grid_spec=pltpu.PrefetchScalarGridSpec(
            num_scalar_prefetch=0,
            grid=(1,),                                  # collapsed grid: one step
            in_specs=[
                pl.BlockSpec((B, T, C), lambda i: (0, 0, 0)),     # x
                pl.BlockSpec((C, 4 * C), lambda i: (0, 0)),       # packed weights
                pl.BlockSpec((1, 4 * C), lambda i: (0, 0)),       # packed biases
            ],
            out_specs=pl.BlockSpec((B, T, C), lambda i: (0, 0, 0)),
            scratch_shapes=[pltpu.VMEM((B * T, C), jnp.float32)],
        ),
        compiler_params=pltpu.CompilerParams(
            dimension_semantics=("arbitrary",)),
    )(x, w_packed, b_packed)


# --------------------------- pure-JAX reference -------------------------------
def attention_reference(x, wqkv, bqkv, wo, bo):
    qkv = x @ wqkv + bqkv
    q, k, v = jnp.split(qkv, 3, axis=-1)
    q = q.reshape(B, T, N_HEAD, HD).transpose(0, 2, 1, 3)
    k = k.reshape(B, T, N_HEAD, HD).transpose(0, 2, 1, 3)
    v = v.reshape(B, T, N_HEAD, HD).transpose(0, 2, 1, 3)
    att = jnp.einsum("bhqd,bhkd->bhqk", q, k) / math.sqrt(HD)
    mask = jnp.tril(jnp.ones((T, T), bool))
    att = jnp.where(mask, att, -jnp.inf)
    att = jax.nn.softmax(att, axis=-1)
    y = jnp.einsum("bhqk,bhkd->bhqd", att, v)
    y = y.transpose(0, 2, 1, 3).reshape(B, T, C)
    return y @ wo + bo


# --------------------------------- main ----------------------------------------
if __name__ == "__main__":
    key = jax.random.PRNGKey(0)
    kx, kw1, kb1, kw2, kb2 = jax.random.split(key, 5)

    x = jax.random.normal(kx, (B, T, C), jnp.float32)
    wqkv = 0.02 * jax.random.normal(kw1, (C, 3 * C), jnp.float32)
    bqkv = 0.01 * jax.random.normal(kb1, (3 * C,), jnp.float32)
    wo = 0.02 * jax.random.normal(kw2, (C, C), jnp.float32)
    bo = 0.01 * jax.random.normal(kb2, (C,), jnp.float32)

    out = causal_self_attention(x, wqkv, bqkv, wo, bo)
    out = jax.block_until_ready(out)

    ref = attention_reference(x, wqkv, bqkv, wo, bo)
    assert out.shape == (B, T, C)
    # bf16 MXU operands + approx reciprocal -> looser tolerance than pure f32.
    err = jnp.max(jnp.abs(out - ref))
    assert jnp.allclose(out, ref, atol=1e-2, rtol=1e-2), f"mismatch, max abs err {err}"

    print("KERNEL_OK")
</pallas_src>

<mosaic_0001>
module attributes {stable_mosaic.version = 11 : i64} {
  func.func @attn_kernel(%arg0: i32, %arg1: memref<2x8x32xf32, #tpu.memory_space<vmem>>, %arg2: memref<32x128xbf16, #tpu.memory_space<vmem>>, %arg3: memref<1x128xf32, #tpu.memory_space<vmem>>, %arg4: memref<2x8x32xf32, #tpu.memory_space<vmem>>, %arg5: memref<16x32xf32, #tpu.memory_space<vmem>>) attributes {dimension_semantics = [#tpu.dimension_semantics<arbitrary>], iteration_bounds = array<i64: 1>, scalar_prefetch = 0 : i64, scratch_operands = 1 : i64, tpu.core_type = #tpu.core_type<tc>, window_params = [{pipeline_mode = #tpu.pipeline_mode<synchronous>, transform_indices = @transform_0, window_bounds = array<i64: 2, 8, 32>}, {pipeline_mode = #tpu.pipeline_mode<synchronous>, transform_indices = @transform_1, window_bounds = array<i64: 32, 128>}, {pipeline_mode = #tpu.pipeline_mode<synchronous>, transform_indices = @transform_2, window_bounds = array<i64: 1, 128>}, {pipeline_mode = #tpu.pipeline_mode<synchronous>, transform_indices = @transform_3, window_bounds = array<i64: 2, 8, 32>}]} {
    %c0 = arith.constant 0 : index
    %c0_0 = arith.constant 0 : index
    %0 = vector.load %arg2[%c0, %c0_0] : memref<32x128xbf16, #tpu.memory_space<vmem>>, vector<32x128xbf16>
    %c0_1 = arith.constant 0 : index
    %c0_2 = arith.constant 0 : index
    %1 = vector.load %arg3[%c0_1, %c0_2] : memref<1x128xf32, #tpu.memory_space<vmem>>, vector<1x128xf32>
    %2 = vector.shape_cast %1 : vector<1x128xf32> to vector<128xf32>
    %3 = vector.extract_strided_slice %2 {offsets = [0], sizes = [96], strides = [1]} : vector<128xf32> to vector<96xf32>
    %4 = vector.extract_strided_slice %2 {offsets = [96], sizes = [32], strides = [1]} : vector<128xf32> to vector<32xf32>
    %c0_3 = arith.constant 0 : index
    %c0_4 = arith.constant 0 : index
    %c0_5 = arith.constant 0 : index
    %5 = vector.load %arg1[%c0_3, %c0_4, %c0_5] : memref<2x8x32xf32, #tpu.memory_space<vmem>>, vector<2x8x32xf32>
    %6 = vector.shape_cast %5 : vector<2x8x32xf32> to vector<16x32xf32>
    %7 = arith.truncf %6 : vector<16x32xf32> to vector<16x32xbf16>
    %8 = vector.extract_strided_slice %0 {offsets = [0, 0], sizes = [32, 96], strides = [1, 1]} : vector<32x128xbf16> to vector<32x96xbf16>
    %cst = arith.constant dense<0.000000e+00> : vector<16x96xf32>
    %9 = tpu.matmul %7, %8, %cst {dimension_numbers = #tpu.dot_dimension_numbers<[1], [0], [0], [1], [0, 0, 1, 1], [], []>} : vector<16x32xbf16>, vector<32x96xbf16>, vector<16x96xf32> -> vector<16x96xf32>
    %10 = vector.shape_cast %3 : vector<96xf32> to vector<1x96xf32>
    %11 = vector.broadcast %10 : vector<1x96xf32> to vector<16x96xf32>
    %12 = arith.addf %9, %11 : vector<16x96xf32>
    %13 = tpu.iota {dimensions = array<i32: 0>} : vector<8x8xi32>
    %14 = tpu.iota {dimensions = array<i32: 1>} : vector<8x8xi32>
    %15 = arith.cmpi sge, %13, %14 : vector<8x8xi32>
    %16 = vector.extract_strided_slice %12 {offsets = [0, 0], sizes = [8, 8], strides = [1, 1]} : vector<16x96xf32> to vector<8x8xf32>
    %17 = arith.truncf %16 : vector<8x8xf32> to vector<8x8xbf16>
    %18 = vector.extract_strided_slice %12 {offsets = [0, 32], sizes = [8, 8], strides = [1, 1]} : vector<16x96xf32> to vector<8x8xf32>
    %19 = arith.truncf %18 : vector<8x8xf32> to vector<8x8xbf16>
    %20 = vector.extract_strided_slice %12 {offsets = [0, 64], sizes = [8, 8], strides = [1, 1]} : vector<16x96xf32> to vector<8x8xf32>
    %21 = arith.truncf %20 : vector<8x8xf32> to vector<8x8xbf16>
    %cst_6 = arith.constant dense<0.000000e+00> : vector<8x8xf32>
    %22 = tpu.matmul %17, %19, %cst_6 {dimension_numbers = #tpu.dot_dimension_numbers<[1], [1], [0], [0], [0, 0, 1, 0], [], []>} : vector<8x8xbf16>, vector<8x8xbf16>, vector<8x8xf32> -> vector<8x8xf32>
    %cst_7 = arith.constant 0xFF800000 : f32
    %23 = vector.broadcast %cst_7 : f32 to vector<8x8xf32>
    %24 = arith.select %15, %22, %23 : vector<8x8xi1>, vector<8x8xf32>
    %cst_8 = arith.constant dense<0xFF800000> : vector<8xf32>
    %25 = vector.multi_reduction <maximumf>, %24, %cst_8 [1] : vector<8x8xf32> to vector<8xf32>
    %26 = vector.shape_cast %25 : vector<8xf32> to vector<8x1xf32>
    %27 = vector.broadcast %26 : vector<8x1xf32> to vector<8x8xf32>
    %28 = arith.subf %24, %27 : vector<8x8xf32>
    %29 = math.exp %28 : vector<8x8xf32>
    %cst_9 = arith.constant dense<0.000000e+00> : vector<8xf32>
    %30 = vector.multi_reduction <add>, %29, %cst_9 [1] : vector<8x8xf32> to vector<8xf32>
    %31 = vector.shape_cast %30 : vector<8xf32> to vector<8x1xf32>
    %32 = tpu.reciprocal %31 {approx = true} : vector<8x1xf32> -> vector<8x1xf32>
    %33 = vector.broadcast %32 : vector<8x1xf32> to vector<8x8xf32>
    %34 = arith.mulf %29, %33 : vector<8x8xf32>
    %35 = arith.truncf %34 : vector<8x8xf32> to vector<8x8xbf16>
    %cst_10 = arith.constant dense<0.000000e+00> : vector<8x8xf32>
    %36 = tpu.matmul %35, %21, %cst_10 {dimension_numbers = #tpu.dot_dimension_numbers<[1], [0], [0], [1], [0, 0, 1, 1], [], []>} : vector<8x8xbf16>, vector<8x8xbf16>, vector<8x8xf32> -> vector<8x8xf32>
    %c0_11 = arith.constant 0 : index
    %c0_12 = arith.constant 0 : index
    %37 = vector.load %arg5[%c0_11, %c0_12] : memref<16x32xf32, #tpu.memory_space<vmem>>, vector<8x8xf32>
    tpu.vector_store %arg5[%c0_11, %c0_12], %36 {strides = array<i32>} : memref<16x32xf32, #tpu.memory_space<vmem>>, vector<8x8xf32>,
    %38 = vector.extract_strided_slice %12 {offsets = [0, 8], sizes = [8, 8], strides = [1, 1]} : vector<16x96xf32> to vector<8x8xf32>
    %39 = arith.truncf %38 : vector<8x8xf32> to vector<8x8xbf16>
    %40 = vector.extract_strided_slice %12 {offsets = [0, 40], sizes = [8, 8], strides = [1, 1]} : vector<16x96xf32> to vector<8x8xf32>
    %41 = arith.truncf %40 : vector<8x8xf32> to vector<8x8xbf16>
    %42 = vector.extract_strided_slice %12 {offsets = [0, 72], sizes = [8, 8], strides = [1, 1]} : vector<16x96xf32> to vector<8x8xf32>
    %43 = arith.truncf %42 : vector<8x8xf32> to vector<8x8xbf16>
    %cst_13 = arith.constant dense<0.000000e+00> : vector<8x8xf32>
    %44 = tpu.matmul %39, %41, %cst_13 {dimension_numbers = #tpu.dot_dimension_numbers<[1], [1], [0], [0], [0, 0, 1, 0], [], []>} : vector<8x8xbf16>, vector<8x8xbf16>, vector<8x8xf32> -> vector<8x8xf32>
    %cst_14 = arith.constant 0xFF800000 : f32
    %45 = vector.broadcast %cst_14 : f32 to vector<8x8xf32>
    %46 = arith.select %15, %44, %45 : vector<8x8xi1>, vector<8x8xf32>
    %cst_15 = arith.constant dense<0xFF800000> : vector<8xf32>
    %47 = vector.multi_reduction <maximumf>, %46, %cst_15 [1] : vector<8x8xf32> to vector<8xf32>
    %48 = vector.shape_cast %47 : vector<8xf32> to vector<8x1xf32>
    %49 = vector.broadcast %48 : vector<8x1xf32> to vector<8x8xf32>
    %50 = arith.subf %46, %49 : vector<8x8xf32>
    %51 = math.exp %50 : vector<8x8xf32>
    %cst_16 = arith.constant dense<0.000000e+00> : vector<8xf32>
    %52 = vector.multi_reduction <add>, %51, %cst_16 [1] : vector<8x8xf32> to vector<8xf32>
    %53 = vector.shape_cast %52 : vector<8xf32> to vector<8x1xf32>
    %54 = tpu.reciprocal %53 {approx = true} : vector<8x1xf32> -> vector<8x1xf32>
    %55 = vector.broadcast %54 : vector<8x1xf32> to vector<8x8xf32>
    %56 = arith.mulf %51, %55 : vector<8x8xf32>
    %57 = arith.truncf %56 : vector<8x8xf32> to vector<8x8xbf16>
    %cst_17 = arith.constant dense<0.000000e+00> : vector<8x8xf32>
    %58 = tpu.matmul %57, %43, %cst_17 {dimension_numbers = #tpu.dot_dimension_numbers<[1], [0], [0], [1], [0, 0, 1, 1], [], []>} : vector<8x8xbf16>, vector<8x8xbf16>, vector<8x8xf32> -> vector<8x8xf32>
    %c0_18 = arith.constant 0 : index
    %c8 = arith.constant 8 : index
    %59 = vector.load %arg5[%c0_18, %c8] : memref<16x32xf32, #tpu.memory_space<vmem>>, vector<8x8xf32>
    tpu.vector_store %arg5[%c0_18, %c8], %58 {strides = array<i32>} : memref<16x32xf32, #tpu.memory_space<vmem>>, vector<8x8xf32>,
    %60 = vector.extract_strided_slice %12 {offsets = [0, 16], sizes = [8, 8], strides = [1, 1]} : vector<16x96xf32> to vector<8x8xf32>
    %61 = arith.truncf %60 : vector<8x8xf32> to vector<8x8xbf16>
    %62 = vector.extract_strided_slice %12 {offsets = [0, 48], sizes = [8, 8], strides = [1, 1]} : vector<16x96xf32> to vector<8x8xf32>
    %63 = arith.truncf %62 : vector<8x8xf32> to vector<8x8xbf16>
    %64 = vector.extract_strided_slice %12 {offsets = [0, 80], sizes = [8, 8], strides = [1, 1]} : vector<16x96xf32> to vector<8x8xf32>
    %65 = arith.truncf %64 : vector<8x8xf32> to vector<8x8xbf16>
    %cst_19 = arith.constant dense<0.000000e+00> : vector<8x8xf32>
    %66 = tpu.matmul %61, %63, %cst_19 {dimension_numbers = #tpu.dot_dimension_numbers<[1], [1], [0], [0], [0, 0, 1, 0], [], []>} : vector<8x8xbf16>, vector<8x8xbf16>, vector<8x8xf32> -> vector<8x8xf32>
    %cst_20 = arith.constant 0xFF800000 : f32
    %67 = vector.broadcast %cst_20 : f32 to vector<8x8xf32>
    %68 = arith.select %15, %66, %67 : vector<8x8xi1>, vector<8x8xf32>
    %cst_21 = arith.constant dense<0xFF800000> : vector<8xf32>
    %69 = vector.multi_reduction <maximumf>, %68, %cst_21 [1] : vector<8x8xf32> to vector<8xf32>
    %70 = vector.shape_cast %69 : vector<8xf32> to vector<8x1xf32>
    %71 = vector.broadcast %70 : vector<8x1xf32> to vector<8x8xf32>
    %72 = arith.subf %68, %71 : vector<8x8xf32>
    %73 = math.exp %72 : vector<8x8xf32>
    %cst_22 = arith.constant dense<0.000000e+00> : vector<8xf32>
    %74 = vector.multi_reduction <add>, %73, %cst_22 [1] : vector<8x8xf32> to vector<8xf32>
    %75 = vector.shape_cast %74 : vector<8xf32> to vector<8x1xf32>
    %76 = tpu.reciprocal %75 {approx = true} : vector<8x1xf32> -> vector<8x1xf32>
    %77 = vector.broadcast %76 : vector<8x1xf32> to vector<8x8xf32>
    %78 = arith.mulf %73, %77 : vector<8x8xf32>
    %79 = arith.truncf %78 : vector<8x8xf32> to vector<8x8xbf16>
    %cst_23 = arith.constant dense<0.000000e+00> : vector<8x8xf32>
    %80 = tpu.matmul %79, %65, %cst_23 {dimension_numbers = #tpu.dot_dimension_numbers<[1], [0], [0], [1], [0, 0, 1, 1], [], []>} : vector<8x8xbf16>, vector<8x8xbf16>, vector<8x8xf32> -> vector<8x8xf32>
    %c0_24 = arith.constant 0 : index
    %c16 = arith.constant 16 : index
    %81 = vector.load %arg5[%c0_24, %c16] : memref<16x32xf32, #tpu.memory_space<vmem>>, vector<8x8xf32>
    tpu.vector_store %arg5[%c0_24, %c16], %80 {strides = array<i32>} : memref<16x32xf32, #tpu.memory_space<vmem>>, vector<8x8xf32>,
    %82 = vector.extract_strided_slice %12 {offsets = [0, 24], sizes = [8, 8], strides = [1, 1]} : vector<16x96xf32> to vector<8x8xf32>
    %83 = arith.truncf %82 : vector<8x8xf32> to vector<8x8xbf16>
    %84 = vector.extract_strided_slice %12 {offsets = [0, 56], sizes = [8, 8], strides = [1, 1]} : vector<16x96xf32> to vector<8x8xf32>
    %85 = arith.truncf %84 : vector<8x8xf32> to vector<8x8xbf16>
    %86 = vector.extract_strided_slice %12 {offsets = [0, 88], sizes = [8, 8], strides = [1, 1]} : vector<16x96xf32> to vector<8x8xf32>
    %87 = arith.truncf %86 : vector<8x8xf32> to vector<8x8xbf16>
    %cst_25 = arith.constant dense<0.000000e+00> : vector<8x8xf32>
    %88 = tpu.matmul %83, %85, %cst_25 {dimension_numbers = #tpu.dot_dimension_numbers<[1], [1], [0], [0], [0, 0, 1, 0], [], []>} : vector<8x8xbf16>, vector<8x8xbf16>, vector<8x8xf32> -> vector<8x8xf32>
    %cst_26 = arith.constant 0xFF800000 : f32
    %89 = vector.broadcast %cst_26 : f32 to vector<8x8xf32>
    %90 = arith.select %15, %88, %89 : vector<8x8xi1>, vector<8x8xf32>
    %cst_27 = arith.constant dense<0xFF800000> : vector<8xf32>
    %91 = vector.multi_reduction <maximumf>, %90, %cst_27 [1] : vector<8x8xf32> to vector<8xf32>
    %92 = vector.shape_cast %91 : vector<8xf32> to vector<8x1xf32>
    %93 = vector.broadcast %92 : vector<8x1xf32> to vector<8x8xf32>
    %94 = arith.subf %90, %93 : vector<8x8xf32>
    %95 = math.exp %94 : vector<8x8xf32>
    %cst_28 = arith.constant dense<0.000000e+00> : vector<8xf32>
    %96 = vector.multi_reduction <add>, %95, %cst_28 [1] : vector<8x8xf32> to vector<8xf32>
    %97 = vector.shape_cast %96 : vector<8xf32> to vector<8x1xf32>
    %98 = tpu.reciprocal %97 {approx = true} : vector<8x1xf32> -> vector<8x1xf32>
    %99 = vector.broadcast %98 : vector<8x1xf32> to vector<8x8xf32>
    %100 = arith.mulf %95, %99 : vector<8x8xf32>
    %101 = arith.truncf %100 : vector<8x8xf32> to vector<8x8xbf16>
    %cst_29 = arith.constant dense<0.000000e+00> : vector<8x8xf32>
    %102 = tpu.matmul %101, %87, %cst_29 {dimension_numbers = #tpu.dot_dimension_numbers<[1], [0], [0], [1], [0, 0, 1, 1], [], []>} : vector<8x8xbf16>, vector<8x8xbf16>, vector<8x8xf32> -> vector<8x8xf32>
    %c0_30 = arith.constant 0 : index
    %c24 = arith.constant 24 : index
    %103 = vector.load %arg5[%c0_30, %c24] : memref<16x32xf32, #tpu.memory_space<vmem>>, vector<8x8xf32>
    tpu.vector_store %arg5[%c0_30, %c24], %102 {strides = array<i32>} : memref<16x32xf32, #tpu.memory_space<vmem>>, vector<8x8xf32>,
    %104 = vector.extract_strided_slice %12 {offsets = [8, 0], sizes = [8, 8], strides = [1, 1]} : vector<16x96xf32> to vector<8x8xf32>
    %105 = arith.truncf %104 : vector<8x8xf32> to vector<8x8xbf16>
    %106 = vector.extract_strided_slice %12 {offsets = [8, 32], sizes = [8, 8], strides = [1, 1]} : vector<16x96xf32> to vector<8x8xf32>
    %107 = arith.truncf %106 : vector<8x8xf32> to vector<8x8xbf16>
    %108 = vector.extract_strided_slice %12 {offsets = [8, 64], sizes = [8, 8], strides = [1, 1]} : vector<16x96xf32> to vector<8x8xf32>
    %109 = arith.truncf %108 : vector<8x8xf32> to vector<8x8xbf16>
    %cst_31 = arith.constant dense<0.000000e+00> : vector<8x8xf32>
    %110 = tpu.matmul %105, %107, %cst_31 {dimension_numbers = #tpu.dot_dimension_numbers<[1], [1], [0], [0], [0, 0, 1, 0], [], []>} : vector<8x8xbf16>, vector<8x8xbf16>, vector<8x8xf32> -> vector<8x8xf32>
    %cst_32 = arith.constant 0xFF800000 : f32
    %111 = vector.broadcast %cst_32 : f32 to vector<8x8xf32>
    %112 = arith.select %15, %110, %111 : vector<8x8xi1>, vector<8x8xf32>
    %cst_33 = arith.constant dense<0xFF800000> : vector<8xf32>
    %113 = vector.multi_reduction <maximumf>, %112, %cst_33 [1] : vector<8x8xf32> to vector<8xf32>
    %114 = vector.shape_cast %113 : vector<8xf32> to vector<8x1xf32>
    %115 = vector.broadcast %114 : vector<8x1xf32> to vector<8x8xf32>
    %116 = arith.subf %112, %115 : vector<8x8xf32>
    %117 = math.exp %116 : vector<8x8xf32>
    %cst_34 = arith.constant dense<0.000000e+00> : vector<8xf32>
    %118 = vector.multi_reduction <add>, %117, %cst_34 [1] : vector<8x8xf32> to vector<8xf32>
    %119 = vector.shape_cast %118 : vector<8xf32> to vector<8x1xf32>
    %120 = tpu.reciprocal %119 {approx = true} : vector<8x1xf32> -> vector<8x1xf32>
    %121 = vector.broadcast %120 : vector<8x1xf32> to vector<8x8xf32>
    %122 = arith.mulf %117, %121 : vector<8x8xf32>
    %123 = arith.truncf %122 : vector<8x8xf32> to vector<8x8xbf16>
    %cst_35 = arith.constant dense<0.000000e+00> : vector<8x8xf32>
    %124 = tpu.matmul %123, %109, %cst_35 {dimension_numbers = #tpu.dot_dimension_numbers<[1], [0], [0], [1], [0, 0, 1, 1], [], []>} : vector<8x8xbf16>, vector<8x8xbf16>, vector<8x8xf32> -> vector<8x8xf32>
    %c8_36 = arith.constant 8 : index
    %c0_37 = arith.constant 0 : index
    %125 = vector.load %arg5[%c8_36, %c0_37] : memref<16x32xf32, #tpu.memory_space<vmem>>, vector<8x8xf32>
    tpu.vector_store %arg5[%c8_36, %c0_37], %124 {strides = array<i32>} : memref<16x32xf32, #tpu.memory_space<vmem>>, vector<8x8xf32>,
    %126 = vector.extract_strided_slice %12 {offsets = [8, 8], sizes = [8, 8], strides = [1, 1]} : vector<16x96xf32> to vector<8x8xf32>
    %127 = arith.truncf %126 : vector<8x8xf32> to vector<8x8xbf16>
    %128 = vector.extract_strided_slice %12 {offsets = [8, 40], sizes = [8, 8], strides = [1, 1]} : vector<16x96xf32> to vector<8x8xf32>
    %129 = arith.truncf %128 : vector<8x8xf32> to vector<8x8xbf16>
    %130 = vector.extract_strided_slice %12 {offsets = [8, 72], sizes = [8, 8], strides = [1, 1]} : vector<16x96xf32> to vector<8x8xf32>
    %131 = arith.truncf %130 : vector<8x8xf32> to vector<8x8xbf16>
    %cst_38 = arith.constant dense<0.000000e+00> : vector<8x8xf32>
    %132 = tpu.matmul %127, %129, %cst_38 {dimension_numbers = #tpu.dot_dimension_numbers<[1], [1], [0], [0], [0, 0, 1, 0], [], []>} : vector<8x8xbf16>, vector<8x8xbf16>, vector<8x8xf32> -> vector<8x8xf32>
    %cst_39 = arith.constant 0xFF800000 : f32
    %133 = vector.broadcast %cst_39 : f32 to vector<8x8xf32>
    %134 = arith.select %15, %132, %133 : vector<8x8xi1>, vector<8x8xf32>
    %cst_40 = arith.constant dense<0xFF800000> : vector<8xf32>
    %135 = vector.multi_reduction <maximumf>, %134, %cst_40 [1] : vector<8x8xf32> to vector<8xf32>
    %136 = vector.shape_cast %135 : vector<8xf32> to vector<8x1xf32>
    %137 = vector.broadcast %136 : vector<8x1xf32> to vector<8x8xf32>
    %138 = arith.subf %134, %137 : vector<8x8xf32>
    %139 = math.exp %138 : vector<8x8xf32>
    %cst_41 = arith.constant dense<0.000000e+00> : vector<8xf32>
    %140 = vector.multi_reduction <add>, %139, %cst_41 [1] : vector<8x8xf32> to vector<8xf32>
    %141 = vector.shape_cast %140 : vector<8xf32> to vector<8x1xf32>
    %142 = tpu.reciprocal %141 {approx = true} : vector<8x1xf32> -> vector<8x1xf32>
    %143 = vector.broadcast %142 : vector<8x1xf32> to vector<8x8xf32>
    %144 = arith.mulf %139, %143 : vector<8x8xf32>
    %145 = arith.truncf %144 : vector<8x8xf32> to vector<8x8xbf16>
    %cst_42 = arith.constant dense<0.000000e+00> : vector<8x8xf32>
    %146 = tpu.matmul %145, %131, %cst_42 {dimension_numbers = #tpu.dot_dimension_numbers<[1], [0], [0], [1], [0, 0, 1, 1], [], []>} : vector<8x8xbf16>, vector<8x8xbf16>, vector<8x8xf32> -> vector<8x8xf32>
    %c8_43 = arith.constant 8 : index
    %c8_44 = arith.constant 8 : index
    %147 = vector.load %arg5[%c8_43, %c8_44] : memref<16x32xf32, #tpu.memory_space<vmem>>, vector<8x8xf32>
    tpu.vector_store %arg5[%c8_43, %c8_44], %146 {strides = array<i32>} : memref<16x32xf32, #tpu.memory_space<vmem>>, vector<8x8xf32>,
    %148 = vector.extract_strided_slice %12 {offsets = [8, 16], sizes = [8, 8], strides = [1, 1]} : vector<16x96xf32> to vector<8x8xf32>
    %149 = arith.truncf %148 : vector<8x8xf32> to vector<8x8xbf16>
    %150 = vector.extract_strided_slice %12 {offsets = [8, 48], sizes = [8, 8], strides = [1, 1]} : vector<16x96xf32> to vector<8x8xf32>
    %151 = arith.truncf %150 : vector<8x8xf32> to vector<8x8xbf16>
    %152 = vector.extract_strided_slice %12 {offsets = [8, 80], sizes = [8, 8], strides = [1, 1]} : vector<16x96xf32> to vector<8x8xf32>
    %153 = arith.truncf %152 : vector<8x8xf32> to vector<8x8xbf16>
    %cst_45 = arith.constant dense<0.000000e+00> : vector<8x8xf32>
    %154 = tpu.matmul %149, %151, %cst_45 {dimension_numbers = #tpu.dot_dimension_numbers<[1], [1], [0], [0], [0, 0, 1, 0], [], []>} : vector<8x8xbf16>, vector<8x8xbf16>, vector<8x8xf32> -> vector<8x8xf32>
    %cst_46 = arith.constant 0xFF800000 : f32
    %155 = vector.broadcast %cst_46 : f32 to vector<8x8xf32>
    %156 = arith.select %15, %154, %155 : vector<8x8xi1>, vector<8x8xf32>
    %cst_47 = arith.constant dense<0xFF800000> : vector<8xf32>
    %157 = vector.multi_reduction <maximumf>, %156, %cst_47 [1] : vector<8x8xf32> to vector<8xf32>
    %158 = vector.shape_cast %157 : vector<8xf32> to vector<8x1xf32>
    %159 = vector.broadcast %158 : vector<8x1xf32> to vector<8x8xf32>
    %160 = arith.subf %156, %159 : vector<8x8xf32>
    %161 = math.exp %160 : vector<8x8xf32>
    %cst_48 = arith.constant dense<0.000000e+00> : vector<8xf32>
    %162 = vector.multi_reduction <add>, %161, %cst_48 [1] : vector<8x8xf32> to vector<8xf32>
    %163 = vector.shape_cast %162 : vector<8xf32> to vector<8x1xf32>
    %164 = tpu.reciprocal %163 {approx = true} : vector<8x1xf32> -> vector<8x1xf32>
    %165 = vector.broadcast %164 : vector<8x1xf32> to vector<8x8xf32>
    %166 = arith.mulf %161, %165 : vector<8x8xf32>
    %167 = arith.truncf %166 : vector<8x8xf32> to vector<8x8xbf16>
    %cst_49 = arith.constant dense<0.000000e+00> : vector<8x8xf32>
    %168 = tpu.matmul %167, %153, %cst_49 {dimension_numbers = #tpu.dot_dimension_numbers<[1], [0], [0], [1], [0, 0, 1, 1], [], []>} : vector<8x8xbf16>, vector<8x8xbf16>, vector<8x8xf32> -> vector<8x8xf32>
    %c8_50 = arith.constant 8 : index
    %c16_51 = arith.constant 16 : index
    %169 = vector.load %arg5[%c8_50, %c16_51] : memref<16x32xf32, #tpu.memory_space<vmem>>, vector<8x8xf32>
    tpu.vector_store %arg5[%c8_50, %c16_51], %168 {strides = array<i32>} : memref<16x32xf32, #tpu.memory_space<vmem>>, vector<8x8xf32>,
    %170 = vector.extract_strided_slice %12 {offsets = [8, 24], sizes = [8, 8], strides = [1, 1]} : vector<16x96xf32> to vector<8x8xf32>
    %171 = arith.truncf %170 : vector<8x8xf32> to vector<8x8xbf16>
    %172 = vector.extract_strided_slice %12 {offsets = [8, 56], sizes = [8, 8], strides = [1, 1]} : vector<16x96xf32> to vector<8x8xf32>
    %173 = arith.truncf %172 : vector<8x8xf32> to vector<8x8xbf16>
    %174 = vector.extract_strided_slice %12 {offsets = [8, 88], sizes = [8, 8], strides = [1, 1]} : vector<16x96xf32> to vector<8x8xf32>
    %175 = arith.truncf %174 : vector<8x8xf32> to vector<8x8xbf16>
    %cst_52 = arith.constant dense<0.000000e+00> : vector<8x8xf32>
    %176 = tpu.matmul %171, %173, %cst_52 {dimension_numbers = #tpu.dot_dimension_numbers<[1], [1], [0], [0], [0, 0, 1, 0], [], []>} : vector<8x8xbf16>, vector<8x8xbf16>, vector<8x8xf32> -> vector<8x8xf32>
    %cst_53 = arith.constant 0xFF800000 : f32
    %177 = vector.broadcast %cst_53 : f32 to vector<8x8xf32>
    %178 = arith.select %15, %176, %177 : vector<8x8xi1>, vector<8x8xf32>
    %cst_54 = arith.constant dense<0xFF800000> : vector<8xf32>
    %179 = vector.multi_reduction <maximumf>, %178, %cst_54 [1] : vector<8x8xf32> to vector<8xf32>
    %180 = vector.shape_cast %179 : vector<8xf32> to vector<8x1xf32>
    %181 = vector.broadcast %180 : vector<8x1xf32> to vector<8x8xf32>
    %182 = arith.subf %178, %181 : vector<8x8xf32>
    %183 = math.exp %182 : vector<8x8xf32>
    %cst_55 = arith.constant dense<0.000000e+00> : vector<8xf32>
    %184 = vector.multi_reduction <add>, %183, %cst_55 [1] : vector<8x8xf32> to vector<8xf32>
    %185 = vector.shape_cast %184 : vector<8xf32> to vector<8x1xf32>
    %186 = tpu.reciprocal %185 {approx = true} : vector<8x1xf32> -> vector<8x1xf32>
    %187 = vector.broadcast %186 : vector<8x1xf32> to vector<8x8xf32>
    %188 = arith.mulf %183, %187 : vector<8x8xf32>
    %189 = arith.truncf %188 : vector<8x8xf32> to vector<8x8xbf16>
    %cst_56 = arith.constant dense<0.000000e+00> : vector<8x8xf32>
    %190 = tpu.matmul %189, %175, %cst_56 {dimension_numbers = #tpu.dot_dimension_numbers<[1], [0], [0], [1], [0, 0, 1, 1], [], []>} : vector<8x8xbf16>, vector<8x8xbf16>, vector<8x8xf32> -> vector<8x8xf32>
    %c8_57 = arith.constant 8 : index
    %c24_58 = arith.constant 24 : index
    %191 = vector.load %arg5[%c8_57, %c24_58] : memref<16x32xf32, #tpu.memory_space<vmem>>, vector<8x8xf32>
    tpu.vector_store %arg5[%c8_57, %c24_58], %190 {strides = array<i32>} : memref<16x32xf32, #tpu.memory_space<vmem>>, vector<8x8xf32>,
    %c0_59 = arith.constant 0 : index
    %c0_60 = arith.constant 0 : index
    %192 = vector.load %arg5[%c0_59, %c0_60] : memref<16x32xf32, #tpu.memory_space<vmem>>, vector<16x32xf32>
    %193 = arith.truncf %192 : vector<16x32xf32> to vector<16x32xbf16>
    %194 = vector.extract_strided_slice %0 {offsets = [0, 96], sizes = [32, 32], strides = [1, 1]} : vector<32x128xbf16> to vector<32x32xbf16>
    %cst_61 = arith.constant dense<0.000000e+00> : vector<16x32xf32>
    %195 = tpu.matmul %193, %194, %cst_61 {dimension_numbers = #tpu.dot_dimension_numbers<[1], [0], [0], [1], [0, 0, 1, 1], [], []>} : vector<16x32xbf16>, vector<32x32xbf16>, vector<16x32xf32> -> vector<16x32xf32>
    %196 = vector.shape_cast %4 : vector<32xf32> to vector<1x32xf32>
    %197 = vector.broadcast %196 : vector<1x32xf32> to vector<16x32xf32>
    %198 = arith.addf %195, %197 : vector<16x32xf32>
    %199 = vector.shape_cast %198 : vector<16x32xf32> to vector<2x8x32xf32>
    %c0_62 = arith.constant 0 : index
    %c0_63 = arith.constant 0 : index
    %c0_64 = arith.constant 0 : index
    %200 = vector.load %arg4[%c0_62, %c0_63, %c0_64] : memref<2x8x32xf32, #tpu.memory_space<vmem>>, vector<2x8x32xf32>
    tpu.vector_store %arg4[%c0_62, %c0_63, %c0_64], %199 {strides = array<i32>} : memref<2x8x32xf32, #tpu.memory_space<vmem>>, vector<2x8x32xf32>,
    return
  }
  func.func @transform_0(%arg0: i32) -> (i32, i32, i32) {
    %c0_i32 = arith.constant 0 : i32
    %c0_i32_0 = arith.constant 0 : i32
    %c0_i32_1 = arith.constant 0 : i32
    %c0_i32_2 = arith.constant 0 : i32
    return %c0_i32, %c0_i32_0, %c0_i32_1 : i32, i32, i32
  }
  func.func @transform_1(%arg0: i32) -> (i32, i32) {
    %c0_i32 = arith.constant 0 : i32
    %c0_i32_0 = arith.constant 0 : i32
    %c0_i32_1 = arith.constant 0 : i32
    return %c0_i32, %c0_i32_0 : i32, i32
  }
  func.func @transform_2(%arg0: i32) -> (i32, i32) {
    %c0_i32 = arith.constant 0 : i32
    %c0_i32_0 = arith.constant 0 : i32
    %c0_i32_1 = arith.constant 0 : i32
    return %c0_i32, %c0_i32_0 : i32, i32
  }
  func.func @transform_3(%arg0: i32) -> (i32, i32, i32) {
    %c0_i32 = arith.constant 0 : i32
    %c0_i32_0 = arith.constant 0 : i32
    %c0_i32_1 = arith.constant 0 : i32
    %c0_i32_2 = arith.constant 0 : i32
    return %c0_i32, %c0_i32_0, %c0_i32_1 : i32, i32, i32
  }
}

</mosaic_0001>

<llo_original>
// kernel: tpu_custom_call.1
$region0: #{tpu_custom_call.1}
  #allocation0 [shape = 'u32[]', space=smem, size = 0x4, offset = 0x4, fixed_abs, tag = 'smem constant byte address 0x4 - core index']
  #allocation1 [shape = 'u32[144,128]{1,0:T(1,128)}', space=vmem, size = 0x12000, scoped, tag = 'internal scratch']
  #allocation2 [shape = 'f32[16,32]{1,0:T(8,128)}', space=vmem, size = 0x2000, scoped, tag = 'scratch operand']
  %s0 = inlined_call_operand.hbm [shape: f32[2,8,32], index: 0, kind: input, shape index: {}]
  %s1 = inlined_call_operand.hbm [shape: bf16[32,128], index: 1, kind: input, shape index: {}]
  %s2 = inlined_call_operand.vmem [shape: f32[1,128], index: 2, kind: input, shape index: {}]
  %s3 = inlined_call_operand.hbm [shape: f32[2,8,32], index: 3, kind: output, shape index: {}]
  %s4 = sld [smem:[#allocation0]]
  $region30: #{tpu_custom_call.1} parent=0
    _
  %s6 = ssub.s32 1, %s4
  %s7 = scalar_select 0, %s6, %s4
  $region1: #{tpu_custom_call.1} parent=0
    #allocation3 [shape = 'u8[8192]{0}', space=vmem, size = 0x2000, scoped, tag = 'input window, operand 0, single buffered']
    #allocation4 [shape = 's32[1]{0}', space=sflag, size = 0x4, scoped, tag = 'scoped memory for tpu_custom_call.1']
    #allocation5 [shape = 's32[1]{0}', space=sflag, size = 0x4, scoped, tag = 'scoped memory for tpu_custom_call.1']
    #allocation6 [shape = 'u8[8192]{0}', space=vmem, size = 0x2000, scoped, tag = 'input window, operand 1, single buffered']
    #allocation7 [shape = 's32[1]{0}', space=sflag, size = 0x4, scoped, tag = 'scoped memory for tpu_custom_call.1']
    #allocation8 [shape = 'u8[8192]{0}', space=vmem, size = 0x2000, scoped, tag = 'output window, operand 0, single buffered']
    %8 = vsyncpa [#allocation4], 0
    %9 = vsyncpa [#allocation7], 0
    %10 = vsyncpa [#allocation5], 0
    // Predicated region
    $region2: #{tpu_custom_call.1} parent=1 // pred_check
      _
    $region3: #{tpu_custom_call.1} parent=1 // pred_check_branch
      %12 = sbr.rel (0) target = $region5
    $region4: #{tpu_custom_call.1} parent=1 // pred_region
      %s14 = ssub.s32 256, 256
      %15 = vsyncadd [#allocation4], %s14
      %s16 = sshll.u32 [#allocation3], 4
      %s17 = int_to_ptr.vmem [resolvable:$true] %s16
      %22 = dma.hbm_to_vmem [thread:$0]  %s0, 256, %s17, [#allocation4], 128, 128, 8
    $region5: #{tpu_custom_call.1} parent=1 // pred_fallthru
      _
    // Predicated region
    $region6: #{tpu_custom_call.1} parent=1 // pred_check
      _
    $region7: #{tpu_custom_call.1} parent=1 // pred_check_branch
      %24 = sbr.rel (0) target = $region9
    $region8: #{tpu_custom_call.1} parent=1 // pred_region
      %s26 = ssub.s32 256, 256
      %27 = vsyncadd [#allocation7], %s26
      %s28 = sshll.u32 [#allocation6], 4
      %s29 = int_to_ptr.vmem [resolvable:$true] %s28
      %34 = dma.hbm_to_vmem [thread:$0]  %s1, 256, %s29, [#allocation7], 64, 64, 4
    $region9: #{tpu_custom_call.1} parent=1 // pred_fallthru
      _
    // Predicated region
    $region10: #{tpu_custom_call.1} parent=1 // pred_check
      _
    $region11: #{tpu_custom_call.1} parent=1 // pred_check_branch
      %36 = sbr.rel (0) target = $region13
    $region12: #{tpu_custom_call.1} parent=1 // pred_region
      _
    $region13: #{tpu_custom_call.1} parent=1 // pred_fallthru
      _
    // Predicated region
    $region14: #{tpu_custom_call.1} parent=1 // pred_check
      _
    $region15: #{tpu_custom_call.1} parent=1 // pred_check_branch
      %38 = sbr.rel (0) target = $region17
    $region16: #{tpu_custom_call.1} parent=1 // pred_region
      %39 = dma.done [#allocation4], 256
    $region17: #{tpu_custom_call.1} parent=1 // pred_fallthru
      _
    // Predicated region
    $region18: #{tpu_custom_call.1} parent=1 // pred_check
      _
    $region19: #{tpu_custom_call.1} parent=1 // pred_check_branch
      %41 = sbr.rel (0) target = $region21
    $region20: #{tpu_custom_call.1} parent=1 // pred_region
      %42 = dma.done [#allocation7], 256
    $region21: #{tpu_custom_call.1} parent=1 // pred_fallthru
      _
    %v44 = vld [vmem:[#allocation6] sm:$0xf]
    %v45 = vld [vmem:[#allocation6 + $0x4] sm:$0xf]
    %v46 = vld [vmem:[#allocation6 + $0x8] sm:$0xf]
    %v47 = vld [vmem:[#allocation6 + $0xc] sm:$0xf]
    %v48 = vld [vmem:[%s2] sm:$0x1]
    %v49 = vld [vmem:[#allocation3] sm:$0xff]
    %v50 = vld [vmem:[#allocation3 + $0x8] sm:$0xff]
    %v51 = vpack.c.bf16 %v50, %v49
    %v53 = vlaneseq
    %v54 = vshrl.u32 %v53, 7
    %v55 = vsub.s32 0, %v54
    %v56 = vrot.slane %v48, %v55
    %v62 = vunpack.c.l.b16 %v44
    %v63 = vunpack.c.l.b16 %v45
    %v64 = vunpack.c.l.b16 %v46
    %v65 = vunpack.c.l.b16 %v47
    %v66 = vpack.c.b16 %v63, %v62
    %v67 = vpack.c.b16 %v65, %v64
    %vm70 = vcmask 261120
    %v72 = vsel %vm70, %v51, 0
    %74 = vmatprep.subr.bf16.mxu0 0
    %75 = vmatpush1.bf16.msra.mxu0 %v66
    %76 = vmatprep.subr.bf16.mxu0 0
    %77 = vmatpush1.bf16.msra.mxu0 %v67
    %78 = vmatprep.subr.bf16.mxu0 0
    %79 = vmatpush1.bf16.msra.mxu0 0
    %80 = vmatprep.subr.bf16.mxu0 0
    %81 = vmatpush1.bf16.msra.mxu0 0
    %82 = vmatprep.subr.bf16.mxu0 0
    %83 = vmatpush1.bf16.msra.mxu0 0
    %84 = vmatprep.subr.bf16.mxu0 0
    %85 = vmatpush1.bf16.msra.mxu0 0
    %86 = vmatprep.subr.bf16.mxu0 0
    %87 = vmatpush1.bf16.msra.mxu0 0
    %88 = vmatprep.subr.bf16.mxu0 0
    %89 = vmatpush1.bf16.msra.mxu0 0
    %90 = vmatprep.subr.bf16.mxu0 0
    %91 = vmatpush1.bf16.msra.mxu0 0
    %92 = vmatprep.subr.bf16.mxu0 0
    %93 = vmatpush1.bf16.msra.mxu0 0
    %94 = vmatprep.subr.bf16.mxu0 0
    %95 = vmatpush1.bf16.msra.mxu0 0
    %96 = vmatprep.subr.bf16.mxu0 0
    %97 = vmatpush1.bf16.msra.mxu0 0
    %98 = vmatprep.subr.bf16.mxu0 0
    %99 = vmatpush1.bf16.msra.mxu0 0
    %100 = vmatprep.subr.bf16.mxu0 0
    %101 = vmatpush1.bf16.msra.mxu0 0
    %102 = vmatprep.subr.bf16.mxu0 0
    %103 = vmatpush1.bf16.msra.mxu0 0
    %104 = vmatprep.subr.bf16.mxu0 0
    %105 = vmatpush1.bf16.msra.mxu0 0
    %106 = vmatprep.mubr.bf16.mxu0 0
    %107 = vmatmul.mubr.bf16.gmra.mrb[0].mxu0 %v72
    %v108 = vpop.f32.mrb[0].mxu0
    %v109 = vadd.f32 %v56, %v108
    %v110 = vpop.f32.mrb[0].mxu0
    %v111 = vpop.f32.mrb[0].mxu0
    %v112 = vadd.f32 %v56, %v111
    %v113 = vpop.f32.mrb[0].mxu0
    %114 = vdwg.mxu0
    %v115 = vlaneseq
    %v116 = vshrl.u32 %v115, 7
    %v117 = vlaneseq
    %v118 = vand.u32 %v117, 127
    %vm119 = vcmp.ge.s32.totalorder %v116, %v118
    %v120 = vpack.c.bf16 %v109, %v109
    %122 = vrot.lane.b32.xlu0 %v120, 96
    %v123 = vpop.permute.xlu0 %122
    %vm124 = vcmask 64512
    %v126 = vsel %vm124, %v120, 0
    %v129 = vsel %vm124, %v123, 0
    %131 = vmatprep.subr.bf16.mxu0 0
    %132 = vmatpush1.bf16.xpose.msra.mxu0 %v129
    %133 = vmatprep.subr.bf16.mxu0 0
    %134 = vmatpush1.bf16.xpose.msra.mxu0 0
    %135 = vmatprep.subr.bf16.mxu0 0
    %136 = vmatpush1.bf16.xpose.msra.mxu0 0
    %137 = vmatprep.subr.bf16.mxu0 0
    %138 = vmatpush1.bf16.xpose.msra.mxu0 0
    %139 = vmatprep.subr.bf16.mxu0 0
    %140 = vmatpush1.bf16.xpose.msra.mxu0 0
    %141 = vmatprep.subr.bf16.mxu0 0
    %142 = vmatpush1.bf16.xpose.msra.mxu0 0
    %143 = vmatprep.subr.bf16.mxu0 0
    %144 = vmatpush1.bf16.xpose.msra.mxu0 0
    %145 = vmatprep.subr.bf16.mxu0 0
    %146 = vmatpush1.bf16.xpose.msra.mxu0 0
    %147 = vmatprep.subr.bf16.mxu0 0
    %148 = vmatpush1.bf16.xpose.msra.mxu0 0
    %149 = vmatprep.subr.bf16.mxu0 0
    %150 = vmatpush1.bf16.xpose.msra.mxu0 0
    %151 = vmatprep.subr.bf16.mxu0 0
    %152 = vmatpush1.bf16.xpose.msra.mxu0 0
    %153 = vmatprep.subr.bf16.mxu0 0
    %154 = vmatpush1.bf16.xpose.msra.mxu0 0
    %155 = vmatprep.subr.bf16.mxu0 0
    %156 = vmatpush1.bf16.xpose.msra.mxu0 0
    %157 = vmatprep.subr.bf16.mxu0 0
    %158 = vmatpush1.bf16.xpose.msra.mxu0 0
    %159 = vmatprep.subr.bf16.mxu0 0
    %160 = vmatpush1.bf16.xpose.msra.mxu0 0
    %161 = vmatprep.subr.bf16.mxu0 0
    %162 = vmatpush1.bf16.xpose.msra.mxu0 0
    %163 = vmatprep.mubr.bf16.mxu0 0
    %164 = vmatmul.mubr.bf16.gmra.mrb[0].mxu0 %v126
    %v165 = vpop.f32.mrb[0].mxu0
    %v166 = vadd.f32 0.0, %v165
    %v167 = vpop.f32.mrb[0].mxu0
    %v168 = vpop.f32.mrb[0].mxu0
    %v169 = vpop.f32.mrb[0].mxu0
    %170 = vdwg.mxu0
    %v171 = vsel %vm119, %v166, -inf
    %v172 = vsel %vm124, %v171, -inf
    %173 = vmax.xlane.f32.xlu0 %v172
    %v174 = vpop.xlane.xlu0 %173
    %v175 = vsub.f32 %v171, %v174
    %v176 = vmul.f32 %v175, 1.442695
    %v177 = vpow.pop %v176
    %v178 = vsel %vm124, %v177, 0.0
    %179 = vadd.xlane.f32.xlu0 %v178
    %v180 = vpop.xlane.xlu0 %179
    %v181 = vrcp.pop %v180
    %v182 = vmul.f32 %v177, %v181
    %v183 = vpack.c.bf16 %v182, %v182
    %184 = vrot.lane.b32.xlu0 %v120, 64
    %v185 = vpop.permute.xlu0 %184
    %v187 = vsel %vm124, %v183, 0
    %vm189 = vcmask 1043456
    %v191 = vsel %vm189, %v185, 0
    %193 = vmatprep.subr.bf16.mxu0 0
    %194 = vmatpush1.bf16.msra.mxu0 %v191
    %195 = vmatprep.subr.bf16.mxu0 0
    %196 = vmatpush1.bf16.msra.mxu0 0
    %197 = vmatprep.subr.bf16.mxu0 0
    %198 = vmatpush1.bf16.msra.mxu0 0
    %199 = vmatprep.subr.bf16.mxu0 0
    %200 = vmatpush1.bf16.msra.mxu0 0
    %201 = vmatprep.subr.bf16.mxu0 0
    %202 = vmatpush1.bf16.msra.mxu0 0
    %203 = vmatprep.subr.bf16.mxu0 0
    %204 = vmatpush1.bf16.msra.mxu0 0
    %205 = vmatprep.subr.bf16.mxu0 0
    %206 = vmatpush1.bf16.msra.mxu0 0
    %207 = vmatprep.subr.bf16.mxu0 0
    %208 = vmatpush1.bf16.msra.mxu0 0
    %209 = vmatprep.subr.bf16.mxu0 0
    %210 = vmatpush1.bf16.msra.mxu0 0
    %211 = vmatprep.subr.bf16.mxu0 0
    %212 = vmatpush1.bf16.msra.mxu0 0
    %213 = vmatprep.subr.bf16.mxu0 0
    %214 = vmatpush1.bf16.msra.mxu0 0
    %215 = vmatprep.subr.bf16.mxu0 0
    %216 = vmatpush1.bf16.msra.mxu0 0
    %217 = vmatprep.subr.bf16.mxu0 0
    %218 = vmatpush1.bf16.msra.mxu0 0
    %219 = vmatprep.subr.bf16.mxu0 0
    %220 = vmatpush1.bf16.msra.mxu0 0
    %221 = vmatprep.subr.bf16.mxu0 0
    %222 = vmatpush1.bf16.msra.mxu0 0
    %223 = vmatprep.subr.bf16.mxu0 0
    %224 = vmatpush1.bf16.msra.mxu0 0
    %225 = vmatprep.mubr.bf16.mxu0 0
    %226 = vmatmul.mubr.bf16.gmra.mrb[0].mxu0 %v187
    %v227 = vpop.f32.mrb[0].mxu0
    %v228 = vadd.f32 0.0, %v227
    %v229 = vpop.f32.mrb[0].mxu0
    %v230 = vpop.f32.mrb[0].mxu0
    %v231 = vpop.f32.mrb[0].mxu0
    %232 = vdwg.mxu0
    %233 = vst.msk [vmem:[#allocation2] sm:$0xff] %vm124, %v228
    %234 = vrot.lane.b32.xlu0 %v120, 120
    %v235 = vpop.permute.xlu0 %234
    %236 = vrot.lane.b32.xlu0 %v120, 88
    %v237 = vpop.permute.xlu0 %236
    %v239 = vsel %vm124, %v235, 0
    %v242 = vsel %vm124, %v237, 0
    %244 = vmatprep.subr.bf16.mxu0 0
    %245 = vmatpush1.bf16.xpose.msra.mxu0 %v242
    %246 = vmatprep.subr.bf16.mxu0 0
    %247 = vmatpush1.bf16.xpose.msra.mxu0 0
    %248 = vmatprep.subr.bf16.mxu0 0
    %249 = vmatpush1.bf16.xpose.msra.mxu0 0
    %250 = vmatprep.subr.bf16.mxu0 0
    %251 = vmatpush1.bf16.xpose.msra.mxu0 0
    %252 = vmatprep.subr.bf16.mxu0 0
    %253 = vmatpush1.bf16.xpose.msra.mxu0 0
    %254 = vmatprep.subr.bf16.mxu0 0
    %255 = vmatpush1.bf16.xpose.msra.mxu0 0
    %256 = vmatprep.subr.bf16.mxu0 0
    %257 = vmatpush1.bf16.xpose.msra.mxu0 0
    %258 = vmatprep.subr.bf16.mxu0 0
    %259 = vmatpush1.bf16.xpose.msra.mxu0 0
    %260 = vmatprep.subr.bf16.mxu0 0
    %261 = vmatpush1.bf16.xpose.msra.mxu0 0
    %262 = vmatprep.subr.bf16.mxu0 0
    %263 = vmatpush1.bf16.xpose.msra.mxu0 0
    %264 = vmatprep.subr.bf16.mxu0 0
    %265 = vmatpush1.bf16.xpose.msra.mxu0 0
    %266 = vmatprep.subr.bf16.mxu0 0
    %267 = vmatpush1.bf16.xpose.msra.mxu0 0
    %268 = vmatprep.subr.bf16.mxu0 0
    %269 = vmatpush1.bf16.xpose.msra.mxu0 0
    %270 = vmatprep.subr.bf16.mxu0 0
    %271 = vmatpush1.bf16.xpose.msra.mxu0 0
    %272 = vmatprep.subr.bf16.mxu0 0
    %273 = vmatpush1.bf16.xpose.msra.mxu0 0
    %274 = vmatprep.subr.bf16.mxu0 0
    %275 = vmatpush1.bf16.xpose.msra.mxu0 0
    %276 = vmatprep.mubr.bf16.mxu0 0
    %277 = vmatmul.mubr.bf16.gmra.mrb[0].mxu0 %v239
    %v278 = vpop.f32.mrb[0].mxu0
    %v279 = vadd.f32 0.0, %v278
    %v280 = vpop.f32.mrb[0].mxu0
    %v281 = vpop.f32.mrb[0].mxu0
    %v282 = vpop.f32.mrb[0].mxu0
    %283 = vdwg.mxu0
    %v284 = vsel %vm119, %v279, -inf
    %v285 = vsel %vm124, %v284, -inf
    %286 = vmax.xlane.f32.xlu0 %v285
    %v287 = vpop.xlane.xlu0 %286
    %v288 = vsub.f32 %v284, %v287
    %v289 = vmul.f32 %v288, 1.442695
    %v290 = vpow.pop %v289
    %v291 = vsel %vm124, %v290, 0.0
    %292 = vadd.xlane.f32.xlu0 %v291
    %v293 = vpop.xlane.xlu0 %292
    %v294 = vrcp.pop %v293
    %v295 = vmul.f32 %v290, %v294
    %v296 = vpack.c.bf16 %v295, %v295
    %297 = vrot.lane.b32.xlu0 %v120, 56
    %v298 = vpop.permute.xlu0 %297
    %v300 = vsel %vm124, %v296, 0
    %v303 = vsel %vm189, %v298, 0
    %305 = vmatprep.subr.bf16.mxu0 0
    %306 = vmatpush1.bf16.msra.mxu0 %v303
    %307 = vmatprep.subr.bf16.mxu0 0
    %308 = vmatpush1.bf16.msra.mxu0 0
    %309 = vmatprep.subr.bf16.mxu0 0
    %310 = vmatpush1.bf16.msra.mxu0 0
    %311 = vmatprep.subr.bf16.mxu0 0
    %312 = vmatpush1.bf16.msra.mxu0 0
    %313 = vmatprep.subr.bf16.mxu0 0
    %314 = vmatpush1.bf16.msra.mxu0 0
    %315 = vmatprep.subr.bf16.mxu0 0
    %316 = vmatpush1.bf16.msra.mxu0 0
    %317 = vmatprep.subr.bf16.mxu0 0
    %318 = vmatpush1.bf16.msra.mxu0 0
    %319 = vmatprep.subr.bf16.mxu0 0
    %320 = vmatpush1.bf16.msra.mxu0 0
    %321 = vmatprep.subr.bf16.mxu0 0
    %322 = vmatpush1.bf16.msra.mxu0 0
    %323 = vmatprep.subr.bf16.mxu0 0
    %324 = vmatpush1.bf16.msra.mxu0 0
    %325 = vmatprep.subr.bf16.mxu0 0
    %326 = vmatpush1.bf16.msra.mxu0 0
    %327 = vmatprep.subr.bf16.mxu0 0
    %328 = vmatpush1.bf16.msra.mxu0 0
    %329 = vmatprep.subr.bf16.mxu0 0
    %330 = vmatpush1.bf16.msra.mxu0 0
    %331 = vmatprep.subr.bf16.mxu0 0
    %332 = vmatpush1.bf16.msra.mxu0 0
    %333 = vmatprep.subr.bf16.mxu0 0
    %334 = vmatpush1.bf16.msra.mxu0 0
    %335 = vmatprep.subr.bf16.mxu0 0
    %336 = vmatpush1.bf16.msra.mxu0 0
    %337 = vmatprep.mubr.bf16.mxu0 0
    %338 = vmatmul.mubr.bf16.gmra.mrb[0].mxu0 %v300
    %v339 = vpop.f32.mrb[0].mxu0
    %v340 = vadd.f32 0.0, %v339
    %v341 = vpop.f32.mrb[0].mxu0
    %v342 = vpop.f32.mrb[0].mxu0
    %v343 = vpop.f32.mrb[0].mxu0
    %344 = vdwg.mxu0
    %346 = vrot.lane.b32.xlu0 %v340, 8
    %v347 = vpop.permute.xlu0 %346
    %vm349 = vcmask 130112
    %350 = vst.msk [vmem:[#allocation2] sm:$0xff] %vm349, %v347
    %351 = vrot.lane.b32.xlu0 %v120, 112
    %v352 = vpop.permute.xlu0 %351
    %353 = vrot.lane.b32.xlu0 %v120, 80
    %v354 = vpop.permute.xlu0 %353
    %v356 = vsel %vm124, %v352, 0
    %v359 = vsel %vm124, %v354, 0
    %361 = vmatprep.subr.bf16.mxu0 0
    %362 = vmatpush1.bf16.xpose.msra.mxu0 %v359
    %363 = vmatprep.subr.bf16.mxu0 0
    %364 = vmatpush1.bf16.xpose.msra.mxu0 0
    %365 = vmatprep.subr.bf16.mxu0 0
    %366 = vmatpush1.bf16.xpose.msra.mxu0 0
    %367 = vmatprep.subr.bf16.mxu0 0
    %368 = vmatpush1.bf16.xpose.msra.mxu0 0
    %369 = vmatprep.subr.bf16.mxu0 0
    %370 = vmatpush1.bf16.xpose.msra.mxu0 0
    %371 = vmatprep.subr.bf16.mxu0 0
    %372 = vmatpush1.bf16.xpose.msra.mxu0 0
    %373 = vmatprep.subr.bf16.mxu0 0
    %374 = vmatpush1.bf16.xpose.msra.mxu0 0
    %375 = vmatprep.subr.bf16.mxu0 0
    %376 = vmatpush1.bf16.xpose.msra.mxu0 0
    %377 = vmatprep.subr.bf16.mxu0 0
    %378 = vmatpush1.bf16.xpose.msra.mxu0 0
    %379 = vmatprep.subr.bf16.mxu0 0
    %380 = vmatpush1.bf16.xpose.msra.mxu0 0
    %381 = vmatprep.subr.bf16.mxu0 0
    %382 = vmatpush1.bf16.xpose.msra.mxu0 0
    %383 = vmatprep.subr.bf16.mxu0 0
    %384 = vmatpush1.bf16.xpose.msra.mxu0 0
    %385 = vmatprep.subr.bf16.mxu0 0
    %386 = vmatpush1.bf16.xpose.msra.mxu0 0
    %387 = vmatprep.subr.bf16.mxu0 0
    %388 = vmatpush1.bf16.xpose.msra.mxu0 0
    %389 = vmatprep.subr.bf16.mxu0 0
    %390 = vmatpush1.bf16.xpose.msra.mxu0 0
    %391 = vmatprep.subr.bf16.mxu0 0
    %392 = vmatpush1.bf16.xpose.msra.mxu0 0
    %393 = vmatprep.mubr.bf16.mxu0 0
    %394 = vmatmul.mubr.bf16.gmra.mrb[0].mxu0 %v356
    %v395 = vpop.f32.mrb[0].mxu0
    %v396 = vadd.f32 0.0, %v395
    %v397 = vpop.f32.mrb[0].mxu0
    %v398 = vpop.f32.mrb[0].mxu0
    %v399 = vpop.f32.mrb[0].mxu0
    %400 = vdwg.mxu0
    %v401 = vsel %vm119, %v396, -inf
    %v402 = vsel %vm124, %v401, -inf
    %403 = vmax.xlane.f32.xlu0 %v402
    %v404 = vpop.xlane.xlu0 %403
    %v405 = vsub.f32 %v401, %v404
    %v406 = vmul.f32 %v405, 1.442695
    %v407 = vpow.pop %v406
    %v408 = vsel %vm124, %v407, 0.0
    %409 = vadd.xlane.f32.xlu0 %v408
    %v410 = vpop.xlane.xlu0 %409
    %v411 = vrcp.pop %v410
    %v412 = vmul.f32 %v407, %v411
    %v413 = vpack.c.bf16 %v412, %v412
    %414 = vrot.lane.b32.xlu0 %v120, 48
    %v415 = vpop.permute.xlu0 %414
    %v417 = vsel %vm124, %v413, 0
    %v420 = vsel %vm189, %v415, 0
    %422 = vmatprep.subr.bf16.mxu0 0
    %423 = vmatpush1.bf16.msra.mxu0 %v420
    %424 = vmatprep.subr.bf16.mxu0 0
    %425 = vmatpush1.bf16.msra.mxu0 0
    %426 = vmatprep.subr.bf16.mxu0 0
    %427 = vmatpush1.bf16.msra.mxu0 0
    %428 = vmatprep.subr.bf16.mxu0 0
    %429 = vmatpush1.bf16.msra.mxu0 0
    %430 = vmatprep.subr.bf16.mxu0 0
    %431 = vmatpush1.bf16.msra.mxu0 0
    %432 = vmatprep.subr.bf16.mxu0 0
    %433 = vmatpush1.bf16.msra.mxu0 0
    %434 = vmatprep.subr.bf16.mxu0 0
    %435 = vmatpush1.bf16.msra.mxu0 0
    %436 = vmatprep.subr.bf16.mxu0 0
    %437 = vmatpush1.bf16.msra.mxu0 0
    %438 = vmatprep.subr.bf16.mxu0 0
    %439 = vmatpush1.bf16.msra.mxu0 0
    %440 = vmatprep.subr.bf16.mxu0 0
    %441 = vmatpush1.bf16.msra.mxu0 0
    %442 = vmatprep.subr.bf16.mxu0 0
    %443 = vmatpush1.bf16.msra.mxu0 0
    %444 = vmatprep.subr.bf16.mxu0 0
    %445 = vmatpush1.bf16.msra.mxu0 0
    %446 = vmatprep.subr.bf16.mxu0 0
    %447 = vmatpush1.bf16.msra.mxu0 0
    %448 = vmatprep.subr.bf16.mxu0 0
    %449 = vmatpush1.bf16.msra.mxu0 0
    %450 = vmatprep.subr.bf16.mxu0 0
    %451 = vmatpush1.bf16.msra.mxu0 0
    %452 = vmatprep.subr.bf16.mxu0 0
    %453 = vmatpush1.bf16.msra.mxu0 0
    %454 = vmatprep.mubr.bf16.mxu0 0
    %455 = vmatmul.mubr.bf16.gmra.mrb[0].mxu0 %v417
    %v456 = vpop.f32.mrb[0].mxu0
    %v457 = vadd.f32 0.0, %v456
    %v458 = vpop.f32.mrb[0].mxu0
    %v459 = vpop.f32.mrb[0].mxu0
    %v460 = vpop.f32.mrb[0].mxu0
    %461 = vdwg.mxu0
    %463 = vrot.lane.b32.xlu0 %v457, 16
    %v464 = vpop.permute.xlu0 %463
    %vm466 = vcmask 195712
    %467 = vst.msk [vmem:[#allocation2] sm:$0xff] %vm466, %v464
    %468 = vrot.lane.b32.xlu0 %v120, 104
    %v469 = vpop.permute.xlu0 %468
    %470 = vrot.lane.b32.xlu0 %v120, 72
    %v471 = vpop.permute.xlu0 %470
    %v473 = vsel %vm124, %v469, 0
    %v476 = vsel %vm124, %v471, 0
    %478 = vmatprep.subr.bf16.mxu0 0
    %479 = vmatpush1.bf16.xpose.msra.mxu0 %v476
    %480 = vmatprep.subr.bf16.mxu0 0
    %481 = vmatpush1.bf16.xpose.msra.mxu0 0
    %482 = vmatprep.subr.bf16.mxu0 0
    %483 = vmatpush1.bf16.xpose.msra.mxu0 0
    %484 = vmatprep.subr.bf16.mxu0 0
    %485 = vmatpush1.bf16.xpose.msra.mxu0 0
    %486 = vmatprep.subr.bf16.mxu0 0
    %487 = vmatpush1.bf16.xpose.msra.mxu0 0
    %488 = vmatprep.subr.bf16.mxu0 0
    %489 = vmatpush1.bf16.xpose.msra.mxu0 0
    %490 = vmatprep.subr.bf16.mxu0 0
    %491 = vmatpush1.bf16.xpose.msra.mxu0 0
    %492 = vmatprep.subr.bf16.mxu0 0
    %493 = vmatpush1.bf16.xpose.msra.mxu0 0
    %494 = vmatprep.subr.bf16.mxu0 0
    %495 = vmatpush1.bf16.xpose.msra.mxu0 0
    %496 = vmatprep.subr.bf16.mxu0 0
    %497 = vmatpush1.bf16.xpose.msra.mxu0 0
    %498 = vmatprep.subr.bf16.mxu0 0
    %499 = vmatpush1.bf16.xpose.msra.mxu0 0
    %500 = vmatprep.subr.bf16.mxu0 0
    %501 = vmatpush1.bf16.xpose.msra.mxu0 0
    %502 = vmatprep.subr.bf16.mxu0 0
    %503 = vmatpush1.bf16.xpose.msra.mxu0 0
    %504 = vmatprep.subr.bf16.mxu0 0
    %505 = vmatpush1.bf16.xpose.msra.mxu0 0
    %506 = vmatprep.subr.bf16.mxu0 0
    %507 = vmatpush1.bf16.xpose.msra.mxu0 0
    %508 = vmatprep.subr.bf16.mxu0 0
    %509 = vmatpush1.bf16.xpose.msra.mxu0 0
    %510 = vmatprep.mubr.bf16.mxu0 0
    %511 = vmatmul.mubr.bf16.gmra.mrb[0].mxu0 %v473
    %v512 = vpop.f32.mrb[0].mxu0
    %v513 = vadd.f32 0.0, %v512
    %v514 = vpop.f32.mrb[0].mxu0
    %v515 = vpop.f32.mrb[0].mxu0
    %v516 = vpop.f32.mrb[0].mxu0
    %517 = vdwg.mxu0
    %v518 = vsel %vm119, %v513, -inf
    %v519 = vsel %vm124, %v518, -inf
    %520 = vmax.xlane.f32.xlu0 %v519
    %v521 = vpop.xlane.xlu0 %520
    %v522 = vsub.f32 %v518, %v521
    %v523 = vmul.f32 %v522, 1.442695
    %v524 = vpow.pop %v523
    %v525 = vsel %vm124, %v524, 0.0
    %526 = vadd.xlane.f32.xlu0 %v525
    %v527 = vpop.xlane.xlu0 %526
    %v528 = vrcp.pop %v527
    %v529 = vmul.f32 %v524, %v528
    %v530 = vpack.c.bf16 %v529, %v529
    %531 = vrot.lane.b32.xlu0 %v120, 40
    %v532 = vpop.permute.xlu0 %531
    %v534 = vsel %vm124, %v530, 0
    %v537 = vsel %vm189, %v532, 0
    %539 = vmatprep.subr.bf16.mxu0 0
    %540 = vmatpush1.bf16.msra.mxu0 %v537
    %541 = vmatprep.subr.bf16.mxu0 0
    %542 = vmatpush1.bf16.msra.mxu0 0
    %543 = vmatprep.subr.bf16.mxu0 0
    %544 = vmatpush1.bf16.msra.mxu0 0
    %545 = vmatprep.subr.bf16.mxu0 0
    %546 = vmatpush1.bf16.msra.mxu0 0
    %547 = vmatprep.subr.bf16.mxu0 0
    %548 = vmatpush1.bf16.msra.mxu0 0
    %549 = vmatprep.subr.bf16.mxu0 0
    %550 = vmatpush1.bf16.msra.mxu0 0
    %551 = vmatprep.subr.bf16.mxu0 0
    %552 = vmatpush1.bf16.msra.mxu0 0
    %553 = vmatprep.subr.bf16.mxu0 0
    %554 = vmatpush1.bf16.msra.mxu0 0
    %555 = vmatprep.subr.bf16.mxu0 0
    %556 = vmatpush1.bf16.msra.mxu0 0
    %557 = vmatprep.subr.bf16.mxu0 0
    %558 = vmatpush1.bf16.msra.mxu0 0
    %559 = vmatprep.subr.bf16.mxu0 0
    %560 = vmatpush1.bf16.msra.mxu0 0
    %561 = vmatprep.subr.bf16.mxu0 0
    %562 = vmatpush1.bf16.msra.mxu0 0
    %563 = vmatprep.subr.bf16.mxu0 0
    %564 = vmatpush1.bf16.msra.mxu0 0
    %565 = vmatprep.subr.bf16.mxu0 0
    %566 = vmatpush1.bf16.msra.mxu0 0
    %567 = vmatprep.subr.bf16.mxu0 0
    %568 = vmatpush1.bf16.msra.mxu0 0
    %569 = vmatprep.subr.bf16.mxu0 0
    %570 = vmatpush1.bf16.msra.mxu0 0
    %571 = vmatprep.mubr.bf16.mxu0 0
    %572 = vmatmul.mubr.bf16.gmra.mrb[0].mxu0 %v534
    %v573 = vpop.f32.mrb[0].mxu0
    %v574 = vadd.f32 0.0, %v573
    %v575 = vpop.f32.mrb[0].mxu0
    %v576 = vpop.f32.mrb[0].mxu0
    %v577 = vpop.f32.mrb[0].mxu0
    %578 = vdwg.mxu0
    %580 = vrot.lane.b32.xlu0 %v574, 24
    %v581 = vpop.permute.xlu0 %580
    %vm583 = vcmask 261312
    %584 = vst.msk [vmem:[#allocation2] sm:$0xff] %vm583, %v581
    %v585 = vpack.c.bf16 %v112, %v112
    %587 = vrot.lane.b32.xlu0 %v585, 96
    %v588 = vpop.permute.xlu0 %587
    %v590 = vsel %vm124, %v585, 0
    %v593 = vsel %vm124, %v588, 0
    %595 = vmatprep.subr.bf16.mxu0 0
    %596 = vmatpush1.bf16.xpose.msra.mxu0 %v593
    %597 = vmatprep.subr.bf16.mxu0 0
    %598 = vmatpush1.bf16.xpose.msra.mxu0 0
    %599 = vmatprep.subr.bf16.mxu0 0
    %600 = vmatpush1.bf16.xpose.msra.mxu0 0
    %601 = vmatprep.subr.bf16.mxu0 0
    %602 = vmatpush1.bf16.xpose.msra.mxu0 0
    %603 = vmatprep.subr.bf16.mxu0 0
    %604 = vmatpush1.bf16.xpose.msra.mxu0 0
    %605 = vmatprep.subr.bf16.mxu0 0
    %606 = vmatpush1.bf16.xpose.msra.mxu0 0
    %607 = vmatprep.subr.bf16.mxu0 0
    %608 = vmatpush1.bf16.xpose.msra.mxu0 0
    %609 = vmatprep.subr.bf16.mxu0 0
    %610 = vmatpush1.bf16.xpose.msra.mxu0 0
    %611 = vmatprep.subr.bf16.mxu0 0
    %612 = vmatpush1.bf16.xpose.msra.mxu0 0
    %613 = vmatprep.subr.bf16.mxu0 0
    %614 = vmatpush1.bf16.xpose.msra.mxu0 0
    %615 = vmatprep.subr.bf16.mxu0 0
    %616 = vmatpush1.bf16.xpose.msra.mxu0 0
    %617 = vmatprep.subr.bf16.mxu0 0
    %618 = vmatpush1.bf16.xpose.msra.mxu0 0
    %619 = vmatprep.subr.bf16.mxu0 0
    %620 = vmatpush1.bf16.xpose.msra.mxu0 0
    %621 = vmatprep.subr.bf16.mxu0 0
    %622 = vmatpush1.bf16.xpose.msra.mxu0 0
    %623 = vmatprep.subr.bf16.mxu0 0
    %624 = vmatpush1.bf16.xpose.msra.mxu0 0
    %625 = vmatprep.subr.bf16.mxu0 0
    %626 = vmatpush1.bf16.xpose.msra.mxu0 0
    %627 = vmatprep.mubr.bf16.mxu0 0
    %628 = vmatmul.mubr.bf16.gmra.mrb[0].mxu0 %v590
    %v629 = vpop.f32.mrb[0].mxu0
    %v630 = vadd.f32 0.0, %v629
    %v631 = vpop.f32.mrb[0].mxu0
    %v632 = vpop.f32.mrb[0].mxu0
    %v633 = vpop.f32.mrb[0].mxu0
    %634 = vdwg.mxu0
    %v635 = vsel %vm119, %v630, -inf
    %v636 = vsel %vm124, %v635, -inf
    %637 = vmax.xlane.f32.xlu0 %v636
    %v638 = vpop.xlane.xlu0 %637
    %v639 = vsub.f32 %v635, %v638
    %v640 = vmul.f32 %v639, 1.442695
    %v641 = vpow.pop %v640
    %v642 = vsel %vm124, %v641, 0.0
    %643 = vadd.xlane.f32.xlu0 %v642
    %v644 = vpop.xlane.xlu0 %643
    %v645 = vrcp.pop %v644
    %v646 = vmul.f32 %v641, %v645
    %v647 = vpack.c.bf16 %v646, %v646
    %648 = vrot.lane.b32.xlu0 %v585, 64
    %v649 = vpop.permute.xlu0 %648
    %v651 = vsel %vm124, %v647, 0
    %v654 = vsel %vm189, %v649, 0
    %656 = vmatprep.subr.bf16.mxu0 0
    %657 = vmatpush1.bf16.msra.mxu0 %v654
    %658 = vmatprep.subr.bf16.mxu0 0
    %659 = vmatpush1.bf16.msra.mxu0 0
    %660 = vmatprep.subr.bf16.mxu0 0
    %661 = vmatpush1.bf16.msra.mxu0 0
    %662 = vmatprep.subr.bf16.mxu0 0
    %663 = vmatpush1.bf16.msra.mxu0 0
    %664 = vmatprep.subr.bf16.mxu0 0
    %665 = vmatpush1.bf16.msra.mxu0 0
    %666 = vmatprep.subr.bf16.mxu0 0
    %667 = vmatpush1.bf16.msra.mxu0 0
    %668 = vmatprep.subr.bf16.mxu0 0
    %669 = vmatpush1.bf16.msra.mxu0 0
    %670 = vmatprep.subr.bf16.mxu0 0
    %671 = vmatpush1.bf16.msra.mxu0 0
    %672 = vmatprep.subr.bf16.mxu0 0
    %673 = vmatpush1.bf16.msra.mxu0 0
    %674 = vmatprep.subr.bf16.mxu0 0
    %675 = vmatpush1.bf16.msra.mxu0 0
    %676 = vmatprep.subr.bf16.mxu0 0
    %677 = vmatpush1.bf16.msra.mxu0 0
    %678 = vmatprep.subr.bf16.mxu0 0
    %679 = vmatpush1.bf16.msra.mxu0 0
    %680 = vmatprep.subr.bf16.mxu0 0
    %681 = vmatpush1.bf16.msra.mxu0 0
    %682 = vmatprep.subr.bf16.mxu0 0
    %683 = vmatpush1.bf16.msra.mxu0 0
    %684 = vmatprep.subr.bf16.mxu0 0
    %685 = vmatpush1.bf16.msra.mxu0 0
    %686 = vmatprep.subr.bf16.mxu0 0
    %687 = vmatpush1.bf16.msra.mxu0 0
    %688 = vmatprep.mubr.bf16.mxu0 0
    %689 = vmatmul.mubr.bf16.gmra.mrb[0].mxu0 %v651
    %v690 = vpop.f32.mrb[0].mxu0
    %v691 = vadd.f32 0.0, %v690
    %v692 = vpop.f32.mrb[0].mxu0
    %v693 = vpop.f32.mrb[0].mxu0
    %v694 = vpop.f32.mrb[0].mxu0
    %695 = vdwg.mxu0
    %696 = vst.msk [vmem:[#allocation2 + $0x8] sm:$0xff] %vm124, %v691
    %697 = vrot.lane.b32.xlu0 %v585, 120
    %v698 = vpop.permute.xlu0 %697
    %699 = vrot.lane.b32.xlu0 %v585, 88
    %v700 = vpop.permute.xlu0 %699
    %v702 = vsel %vm124, %v698, 0
    %v705 = vsel %vm124, %v700, 0
    %707 = vmatprep.subr.bf16.mxu0 0
    %708 = vmatpush1.bf16.xpose.msra.mxu0 %v705
    %709 = vmatprep.subr.bf16.mxu0 0
    %710 = vmatpush1.bf16.xpose.msra.mxu0 0
    %711 = vmatprep.subr.bf16.mxu0 0
    %712 = vmatpush1.bf16.xpose.msra.mxu0 0
    %713 = vmatprep.subr.bf16.mxu0 0
    %714 = vmatpush1.bf16.xpose.msra.mxu0 0
    %715 = vmatprep.subr.bf16.mxu0 0
    %716 = vmatpush1.bf16.xpose.msra.mxu0 0
    %717 = vmatprep.subr.bf16.mxu0 0
    %718 = vmatpush1.bf16.xpose.msra.mxu0 0
    %719 = vmatprep.subr.bf16.mxu0 0
    %720 = vmatpush1.bf16.xpose.msra.mxu0 0
    %721 = vmatprep.subr.bf16.mxu0 0
    %722 = vmatpush1.bf16.xpose.msra.mxu0 0
    %723 = vmatprep.subr.bf16.mxu0 0
    %724 = vmatpush1.bf16.xpose.msra.mxu0 0
    %725 = vmatprep.subr.bf16.mxu0 0
    %726 = vmatpush1.bf16.xpose.msra.mxu0 0
    %727 = vmatprep.subr.bf16.mxu0 0
    %728 = vmatpush1.bf16.xpose.msra.mxu0 0
    %729 = vmatprep.subr.bf16.mxu0 0
    %730 = vmatpush1.bf16.xpose.msra.mxu0 0
    %731 = vmatprep.subr.bf16.mxu0 0
    %732 = vmatpush1.bf16.xpose.msra.mxu0 0
    %733 = vmatprep.subr.bf16.mxu0 0
    %734 = vmatpush1.bf16.xpose.msra.mxu0 0
    %735 = vmatprep.subr.bf16.mxu0 0
    %736 = vmatpush1.bf16.xpose.msra.mxu0 0
    %737 = vmatprep.subr.bf16.mxu0 0
    %738 = vmatpush1.bf16.xpose.msra.mxu0 0
    %739 = vmatprep.mubr.bf16.mxu0 0
    %740 = vmatmul.mubr.bf16.gmra.mrb[0].mxu0 %v702
    %v741 = vpop.f32.mrb[0].mxu0
    %v742 = vadd.f32 0.0, %v741
    %v743 = vpop.f32.mrb[0].mxu0
    %v744 = vpop.f32.mrb[0].mxu0
    %v745 = vpop.f32.mrb[0].mxu0
    %746 = vdwg.mxu0
    %v747 = vsel %vm119, %v742, -inf
    %v748 = vsel %vm124, %v747, -inf
    %749 = vmax.xlane.f32.xlu0 %v748
    %v750 = vpop.xlane.xlu0 %749
    %v751 = vsub.f32 %v747, %v750
    %v752 = vmul.f32 %v751, 1.442695
    %v753 = vpow.pop %v752
    %v754 = vsel %vm124, %v753, 0.0
    %755 = vadd.xlane.f32.xlu0 %v754
    %v756 = vpop.xlane.xlu0 %755
    %v757 = vrcp.pop %v756
    %v758 = vmul.f32 %v753, %v757
    %v759 = vpack.c.bf16 %v758, %v758
    %760 = vrot.lane.b32.xlu0 %v585, 56
    %v761 = vpop.permute.xlu0 %760
    %v763 = vsel %vm124, %v759, 0
    %v766 = vsel %vm189, %v761, 0
    %768 = vmatprep.subr.bf16.mxu0 0
    %769 = vmatpush1.bf16.msra.mxu0 %v766
    %770 = vmatprep.subr.bf16.mxu0 0
    %771 = vmatpush1.bf16.msra.mxu0 0
    %772 = vmatprep.subr.bf16.mxu0 0
    %773 = vmatpush1.bf16.msra.mxu0 0
    %774 = vmatprep.subr.bf16.mxu0 0
    %775 = vmatpush1.bf16.msra.mxu0 0
    %776 = vmatprep.subr.bf16.mxu0 0
    %777 = vmatpush1.bf16.msra.mxu0 0
    %778 = vmatprep.subr.bf16.mxu0 0
    %779 = vmatpush1.bf16.msra.mxu0 0
    %780 = vmatprep.subr.bf16.mxu0 0
    %781 = vmatpush1.bf16.msra.mxu0 0
    %782 = vmatprep.subr.bf16.mxu0 0
    %783 = vmatpush1.bf16.msra.mxu0 0
    %784 = vmatprep.subr.bf16.mxu0 0
    %785 = vmatpush1.bf16.msra.mxu0 0
    %786 = vmatprep.subr.bf16.mxu0 0
    %787 = vmatpush1.bf16.msra.mxu0 0
    %788 = vmatprep.subr.bf16.mxu0 0
    %789 = vmatpush1.bf16.msra.mxu0 0
    %790 = vmatprep.subr.bf16.mxu0 0
    %791 = vmatpush1.bf16.msra.mxu0 0
    %792 = vmatprep.subr.bf16.mxu0 0
    %793 = vmatpush1.bf16.msra.mxu0 0
    %794 = vmatprep.subr.bf16.mxu0 0
    %795 = vmatpush1.bf16.msra.mxu0 0
    %796 = vmatprep.subr.bf16.mxu0 0
    %797 = vmatpush1.bf16.msra.mxu0 0
    %798 = vmatprep.subr.bf16.mxu0 0
    %799 = vmatpush1.bf16.msra.mxu0 0
    %800 = vmatprep.mubr.bf16.mxu0 0
    %801 = vmatmul.mubr.bf16.gmra.mrb[0].mxu0 %v763
    %v802 = vpop.f32.mrb[0].mxu0
    %v803 = vadd.f32 0.0, %v802
    %v804 = vpop.f32.mrb[0].mxu0
    %v805 = vpop.f32.mrb[0].mxu0
    %v806 = vpop.f32.mrb[0].mxu0
    %807 = vdwg.mxu0
    %809 = vrot.lane.b32.xlu0 %v803, 8
    %v810 = vpop.permute.xlu0 %809
    %812 = vst.msk [vmem:[#allocation2 + $0x8] sm:$0xff] %vm349, %v810
    %813 = vrot.lane.b32.xlu0 %v585, 112
    %v814 = vpop.permute.xlu0 %813
    %815 = vrot.lane.b32.xlu0 %v585, 80
    %v816 = vpop.permute.xlu0 %815
    %v818 = vsel %vm124, %v814, 0
    %v821 = vsel %vm124, %v816, 0
    %823 = vmatprep.subr.bf16.mxu0 0
    %824 = vmatpush1.bf16.xpose.msra.mxu0 %v821
    %825 = vmatprep.subr.bf16.mxu0 0
    %826 = vmatpush1.bf16.xpose.msra.mxu0 0
    %827 = vmatprep.subr.bf16.mxu0 0
    %828 = vmatpush1.bf16.xpose.msra.mxu0 0
    %829 = vmatprep.subr.bf16.mxu0 0
    %830 = vmatpush1.bf16.xpose.msra.mxu0 0
    %831 = vmatprep.subr.bf16.mxu0 0
    %832 = vmatpush1.bf16.xpose.msra.mxu0 0
    %833 = vmatprep.subr.bf16.mxu0 0
    %834 = vmatpush1.bf16.xpose.msra.mxu0 0
    %835 = vmatprep.subr.bf16.mxu0 0
    %836 = vmatpush1.bf16.xpose.msra.mxu0 0
    %837 = vmatprep.subr.bf16.mxu0 0
    %838 = vmatpush1.bf16.xpose.msra.mxu0 0
    %839 = vmatprep.subr.bf16.mxu0 0
    %840 = vmatpush1.bf16.xpose.msra.mxu0 0
    %841 = vmatprep.subr.bf16.mxu0 0
    %842 = vmatpush1.bf16.xpose.msra.mxu0 0
    %843 = vmatprep.subr.bf16.mxu0 0
    %844 = vmatpush1.bf16.xpose.msra.mxu0 0
    %845 = vmatprep.subr.bf16.mxu0 0
    %846 = vmatpush1.bf16.xpose.msra.mxu0 0
    %847 = vmatprep.subr.bf16.mxu0 0
    %848 = vmatpush1.bf16.xpose.msra.mxu0 0
    %849 = vmatprep.subr.bf16.mxu0 0
    %850 = vmatpush1.bf16.xpose.msra.mxu0 0
    %851 = vmatprep.subr.bf16.mxu0 0
    %852 = vmatpush1.bf16.xpose.msra.mxu0 0
    %853 = vmatprep.subr.bf16.mxu0 0
    %854 = vmatpush1.bf16.xpose.msra.mxu0 0
    %855 = vmatprep.mubr.bf16.mxu0 0
    %856 = vmatmul.mubr.bf16.gmra.mrb[0].mxu0 %v818
    %v857 = vpop.f32.mrb[0].mxu0
    %v858 = vadd.f32 0.0, %v857
    %v859 = vpop.f32.mrb[0].mxu0
    %v860 = vpop.f32.mrb[0].mxu0
    %v861 = vpop.f32.mrb[0].mxu0
    %862 = vdwg.mxu0
    %v863 = vsel %vm119, %v858, -inf
    %v864 = vsel %vm124, %v863, -inf
    %865 = vmax.xlane.f32.xlu0 %v864
    %v866 = vpop.xlane.xlu0 %865
    %v867 = vsub.f32 %v863, %v866
    %v868 = vmul.f32 %v867, 1.442695
    %v869 = vpow.pop %v868
    %v870 = vsel %vm124, %v869, 0.0
    %871 = vadd.xlane.f32.xlu0 %v870
    %v872 = vpop.xlane.xlu0 %871
    %v873 = vrcp.pop %v872
    %v874 = vmul.f32 %v869, %v873
    %v875 = vpack.c.bf16 %v874, %v874
    %876 = vrot.lane.b32.xlu0 %v585, 48
    %v877 = vpop.permute.xlu0 %876
    %v879 = vsel %vm124, %v875, 0
    %v882 = vsel %vm189, %v877, 0
    %884 = vmatprep.subr.bf16.mxu0 0
    %885 = vmatpush1.bf16.msra.mxu0 %v882
    %886 = vmatprep.subr.bf16.mxu0 0
    %887 = vmatpush1.bf16.msra.mxu0 0
    %888 = vmatprep.subr.bf16.mxu0 0
    %889 = vmatpush1.bf16.msra.mxu0 0
    %890 = vmatprep.subr.bf16.mxu0 0
    %891 = vmatpush1.bf16.msra.mxu0 0
    %892 = vmatprep.subr.bf16.mxu0 0
    %893 = vmatpush1.bf16.msra.mxu0 0
    %894 = vmatprep.subr.bf16.mxu0 0
    %895 = vmatpush1.bf16.msra.mxu0 0
    %896 = vmatprep.subr.bf16.mxu0 0
    %897 = vmatpush1.bf16.msra.mxu0 0
    %898 = vmatprep.subr.bf16.mxu0 0
    %899 = vmatpush1.bf16.msra.mxu0 0
    %900 = vmatprep.subr.bf16.mxu0 0
    %901 = vmatpush1.bf16.msra.mxu0 0
    %902 = vmatprep.subr.bf16.mxu0 0
    %903 = vmatpush1.bf16.msra.mxu0 0
    %904 = vmatprep.subr.bf16.mxu0 0
    %905 = vmatpush1.bf16.msra.mxu0 0
    %906 = vmatprep.subr.bf16.mxu0 0
    %907 = vmatpush1.bf16.msra.mxu0 0
    %908 = vmatprep.subr.bf16.mxu0 0
    %909 = vmatpush1.bf16.msra.mxu0 0
    %910 = vmatprep.subr.bf16.mxu0 0
    %911 = vmatpush1.bf16.msra.mxu0 0
    %912 = vmatprep.subr.bf16.mxu0 0
    %913 = vmatpush1.bf16.msra.mxu0 0
    %914 = vmatprep.subr.bf16.mxu0 0
    %915 = vmatpush1.bf16.msra.mxu0 0
    %916 = vmatprep.mubr.bf16.mxu0 0
    %917 = vmatmul.mubr.bf16.gmra.mrb[0].mxu0 %v879
    %v918 = vpop.f32.mrb[0].mxu0
    %v919 = vadd.f32 0.0, %v918
    %v920 = vpop.f32.mrb[0].mxu0
    %v921 = vpop.f32.mrb[0].mxu0
    %v922 = vpop.f32.mrb[0].mxu0
    %923 = vdwg.mxu0
    %925 = vrot.lane.b32.xlu0 %v919, 16
    %v926 = vpop.permute.xlu0 %925
    %928 = vst.msk [vmem:[#allocation2 + $0x8] sm:$0xff] %vm466, %v926
    %929 = vrot.lane.b32.xlu0 %v585, 104
    %v930 = vpop.permute.xlu0 %929
    %931 = vrot.lane.b32.xlu0 %v585, 72
    %v932 = vpop.permute.xlu0 %931
    %v934 = vsel %vm124, %v930, 0
    %v937 = vsel %vm124, %v932, 0
    %939 = vmatprep.subr.bf16.mxu0 0
    %940 = vmatpush1.bf16.xpose.msra.mxu0 %v937
    %941 = vmatprep.subr.bf16.mxu0 0
    %942 = vmatpush1.bf16.xpose.msra.mxu0 0
    %943 = vmatprep.subr.bf16.mxu0 0
    %944 = vmatpush1.bf16.xpose.msra.mxu0 0
    %945 = vmatprep.subr.bf16.mxu0 0
    %946 = vmatpush1.bf16.xpose.msra.mxu0 0
    %947 = vmatprep.subr.bf16.mxu0 0
    %948 = vmatpush1.bf16.xpose.msra.mxu0 0
    %949 = vmatprep.subr.bf16.mxu0 0
    %950 = vmatpush1.bf16.xpose.msra.mxu0 0
    %951 = vmatprep.subr.bf16.mxu0 0
    %952 = vmatpush1.bf16.xpose.msra.mxu0 0
    %953 = vmatprep.subr.bf16.mxu0 0
    %954 = vmatpush1.bf16.xpose.msra.mxu0 0
    %955 = vmatprep.subr.bf16.mxu0 0
    %956 = vmatpush1.bf16.xpose.msra.mxu0 0
    %957 = vmatprep.subr.bf16.mxu0 0
    %958 = vmatpush1.bf16.xpose.msra.mxu0 0
    %959 = vmatprep.subr.bf16.mxu0 0
    %960 = vmatpush1.bf16.xpose.msra.mxu0 0
    %961 = vmatprep.subr.bf16.mxu0 0
    %962 = vmatpush1.bf16.xpose.msra.mxu0 0
    %963 = vmatprep.subr.bf16.mxu0 0
    %964 = vmatpush1.bf16.xpose.msra.mxu0 0
    %965 = vmatprep.subr.bf16.mxu0 0
    %966 = vmatpush1.bf16.xpose.msra.mxu0 0
    %967 = vmatprep.subr.bf16.mxu0 0
    %968 = vmatpush1.bf16.xpose.msra.mxu0 0
    %969 = vmatprep.subr.bf16.mxu0 0
    %970 = vmatpush1.bf16.xpose.msra.mxu0 0
    %971 = vmatprep.mubr.bf16.mxu0 0
    %972 = vmatmul.mubr.bf16.gmra.mrb[0].mxu0 %v934
    %v973 = vpop.f32.mrb[0].mxu0
    %v974 = vadd.f32 0.0, %v973
    %v975 = vpop.f32.mrb[0].mxu0
    %v976 = vpop.f32.mrb[0].mxu0
    %v977 = vpop.f32.mrb[0].mxu0
    %978 = vdwg.mxu0
    %v979 = vsel %vm119, %v974, -inf
    %v980 = vsel %vm124, %v979, -inf
    %981 = vmax.xlane.f32.xlu0 %v980
    %v982 = vpop.xlane.xlu0 %981
    %v983 = vsub.f32 %v979, %v982
    %v984 = vmul.f32 %v983, 1.442695
    %v985 = vpow.pop %v984
    %v986 = vsel %vm124, %v985, 0.0
    %987 = vadd.xlane.f32.xlu0 %v986
    %v988 = vpop.xlane.xlu0 %987
    %v989 = vrcp.pop %v988
    %v990 = vmul.f32 %v985, %v989
    %v991 = vpack.c.bf16 %v990, %v990
    %992 = vrot.lane.b32.xlu0 %v585, 40
    %v993 = vpop.permute.xlu0 %992
    %v995 = vsel %vm124, %v991, 0
    %v998 = vsel %vm189, %v993, 0
    %1000 = vmatprep.subr.bf16.mxu0 0
    %1001 = vmatpush1.bf16.msra.mxu0 %v998
    %1002 = vmatprep.subr.bf16.mxu0 0
    %1003 = vmatpush1.bf16.msra.mxu0 0
    %1004 = vmatprep.subr.bf16.mxu0 0
    %1005 = vmatpush1.bf16.msra.mxu0 0
    %1006 = vmatprep.subr.bf16.mxu0 0
    %1007 = vmatpush1.bf16.msra.mxu0 0
    %1008 = vmatprep.subr.bf16.mxu0 0
    %1009 = vmatpush1.bf16.msra.mxu0 0
    %1010 = vmatprep.subr.bf16.mxu0 0
    %1011 = vmatpush1.bf16.msra.mxu0 0
    %1012 = vmatprep.subr.bf16.mxu0 0
    %1013 = vmatpush1.bf16.msra.mxu0 0
    %1014 = vmatprep.subr.bf16.mxu0 0
    %1015 = vmatpush1.bf16.msra.mxu0 0
    %1016 = vmatprep.subr.bf16.mxu0 0
    %1017 = vmatpush1.bf16.msra.mxu0 0
    %1018 = vmatprep.subr.bf16.mxu0 0
    %1019 = vmatpush1.bf16.msra.mxu0 0
    %1020 = vmatprep.subr.bf16.mxu0 0
    %1021 = vmatpush1.bf16.msra.mxu0 0
    %1022 = vmatprep.subr.bf16.mxu0 0
    %1023 = vmatpush1.bf16.msra.mxu0 0
    %1024 = vmatprep.subr.bf16.mxu0 0
    %1025 = vmatpush1.bf16.msra.mxu0 0
    %1026 = vmatprep.subr.bf16.mxu0 0
    %1027 = vmatpush1.bf16.msra.mxu0 0
    %1028 = vmatprep.subr.bf16.mxu0 0
    %1029 = vmatpush1.bf16.msra.mxu0 0
    %1030 = vmatprep.subr.bf16.mxu0 0
    %1031 = vmatpush1.bf16.msra.mxu0 0
    %1032 = vmatprep.mubr.bf16.mxu0 0
    %1033 = vmatmul.mubr.bf16.gmra.mrb[0].mxu0 %v995
    %v1034 = vpop.f32.mrb[0].mxu0
    %v1035 = vadd.f32 0.0, %v1034
    %v1036 = vpop.f32.mrb[0].mxu0
    %v1037 = vpop.f32.mrb[0].mxu0
    %v1038 = vpop.f32.mrb[0].mxu0
    %1039 = vdwg.mxu0
    %1041 = vrot.lane.b32.xlu0 %v1035, 24
    %v1042 = vpop.permute.xlu0 %1041
    %1044 = vst.msk [vmem:[#allocation2 + $0x8] sm:$0xff] %vm583, %v1042
    %v1045 = vld [vmem:[#allocation2] sm:$0xff]
    %v1046 = vld [vmem:[#allocation2 + $0x8] sm:$0xff]
    %v1047 = vpack.c.bf16 %v1046, %v1045
    %1048 = vrot.lane.b32.xlu0 %v66, 32
    %v1049 = vpop.permute.xlu0 %1048
    %1050 = vrot.lane.b32.xlu0 %v67, 32
    %v1051 = vpop.permute.xlu0 %1050
    %1054 = vrot.lane.b32.xlu0 %v56, 32
    %v1055 = vpop.permute.xlu0 %1054
    %v1058 = vsel %vm70, %v1047, 0
    %1060 = vmatprep.subr.bf16.mxu0 0
    %1061 = vmatpush1.bf16.msra.mxu0 %v1049
    %1062 = vmatprep.subr.bf16.mxu0 0
    %1063 = vmatpush1.bf16.msra.mxu0 %v1051
    %1064 = vmatprep.subr.bf16.mxu0 0
    %1065 = vmatpush1.bf16.msra.mxu0 0
    %1066 = vmatprep.subr.bf16.mxu0 0
    %1067 = vmatpush1.bf16.msra.mxu0 0
    %1068 = vmatprep.subr.bf16.mxu0 0
    %1069 = vmatpush1.bf16.msra.mxu0 0
    %1070 = vmatprep.subr.bf16.mxu0 0
    %1071 = vmatpush1.bf16.msra.mxu0 0
    %1072 = vmatprep.subr.bf16.mxu0 0
    %1073 = vmatpush1.bf16.msra.mxu0 0
    %1074 = vmatprep.subr.bf16.mxu0 0
    %1075 = vmatpush1.bf16.msra.mxu0 0
    %1076 = vmatprep.subr.bf16.mxu0 0
    %1077 = vmatpush1.bf16.msra.mxu0 0
    %1078 = vmatprep.subr.bf16.mxu0 0
    %1079 = vmatpush1.bf16.msra.mxu0 0
    %1080 = vmatprep.subr.bf16.mxu0 0
    %1081 = vmatpush1.bf16.msra.mxu0 0
    %1082 = vmatprep.subr.bf16.mxu0 0
    %1083 = vmatpush1.bf16.msra.mxu0 0
    %1084 = vmatprep.subr.bf16.mxu0 0
    %1085 = vmatpush1.bf16.msra.mxu0 0
    %1086 = vmatprep.subr.bf16.mxu0 0
    %1087 = vmatpush1.bf16.msra.mxu0 0
    %1088 = vmatprep.subr.bf16.mxu0 0
    %1089 = vmatpush1.bf16.msra.mxu0 0
    %1090 = vmatprep.subr.bf16.mxu0 0
    %1091 = vmatpush1.bf16.msra.mxu0 0
    %1092 = vmatprep.mubr.bf16.mxu0 0
    %1093 = vmatmul.mubr.bf16.gmra.mrb[0].mxu0 %v1058
    %v1094 = vpop.f32.mrb[0].mxu0
    %v1095 = vadd.f32 %v1055, %v1094
    %v1096 = vpop.f32.mrb[0].mxu0
    %v1097 = vpop.f32.mrb[0].mxu0
    %v1098 = vadd.f32 %v1055, %v1097
    %v1099 = vpop.f32.mrb[0].mxu0
    %1100 = vdwg.mxu0
    %1101 = vst.msk [vmem:[#allocation8] sm:$0xff] %vm70, %v1095
    %1102 = vst.msk [vmem:[#allocation8 + $0x8] sm:$0xff] %vm70, %v1098
    // Predicated region
    $region22: #{tpu_custom_call.1} parent=1 // pred_check
      _
    $region23: #{tpu_custom_call.1} parent=1 // pred_check_branch
      %1104 = sbr.rel (0) target = $region25
    $region24: #{tpu_custom_call.1} parent=1 // pred_region
      %s1106 = ssub.s32 256, 256
      %1107 = vsyncadd [#allocation5], %s1106
      %s1108 = sshll.u32 [#allocation8], 4
      %s1109 = int_to_ptr.vmem [resolvable:$true] %s1108
      %1114 = dma.vmem_to_hbm [thread:$0]  %s1109, 256, %s3, [#allocation5], 128, 128, 8
    $region25: #{tpu_custom_call.1} parent=1 // pred_fallthru
      _
    // Predicated region
    $region26: #{tpu_custom_call.1} parent=1 // pred_check
      _
    $region27: #{tpu_custom_call.1} parent=1 // pred_check_branch
      %1116 = sbr.rel (0) target = $region29
    $region28: #{tpu_custom_call.1} parent=1 // pred_region
      %1117 = dma.done [#allocation5], 256
    $region29: #{tpu_custom_call.1} parent=1 // pred_fallthru
      _
    %1118 = vsyncpa [#allocation4], 1
    %1119 = vsyncpa [#allocation7], 1
    %1120 = vsyncpa [#allocation5], 1

</llo_original>
